<compile_context>
chip_gen: v7x
topology: tpu7x:2x2x1
jax: 0.10.0
libtpu: 0.0.40
codegen_flags: <defaults>
</compile_context>

<pallas_src>
import functools
import math

import jax
import jax.numpy as jnp
from jax.experimental import pallas as pl
from jax.experimental.pallas import tpu as pltpu


# ---------------------------------------------------------------------------
# Kernel: grid = (batch, query-tile); all heads handled by batched contractions.
# ---------------------------------------------------------------------------
def _self_attn_kernel(*refs, tq, num_q_tiles, scale, has_mask, approx_recip):
    if has_mask:
        x_ref, mask_ref, w_ref, b_ref, o_ref = refs
    else:
        x_ref, w_ref, b_ref, o_ref = refs

    kv = x_ref[...]                                      # (H, L, D)  q == k == v
    if num_q_tiles == 1:
        q = kv                                           # whole L is the query tile
    else:
        q_start = pl.multiple_of(pl.program_id(1) * tq, tq)
        q = x_ref[:, pl.ds(q_start, tq), :]              # (H, tq, D) VMEM slice, no extra DMA

    # energy[h, q, k] = sum_d q[h, q, d] * k[h, k, d]   (single heads-batched MXU pass)
    energy = jnp.einsum('hqd,hkd->hqk', q, kv,
                        preferred_element_type=jnp.float32)       # (H, tq, L) f32

    if has_mask:
        # int8 -> f32 compare keeps the mask in the f32 layout (no relayout),
        # broadcast over the leading heads axis is free (vreg-group replication).
        mask_is_zero = mask_ref[...].astype(jnp.float32) == 0.0   # (tq, L)
        energy = jnp.where(mask_is_zero[None], jnp.float32(-1e20), energy)

    # PyTorch order: masked_fill first, THEN divide by sqrt(embed_size).
    logits = energy * scale
    m = jnp.max(logits, axis=-1, keepdims=True)
    e = jnp.exp(logits - m)
    inv = pl.reciprocal(jnp.sum(e, axis=-1, keepdims=True), approx=approx_recip)
    attn = (e * inv).astype(kv.dtype)                    # (H, tq, L)

    # out[h, q, d] = sum_k attn[h, q, k] * v[h, k, d]
    ctx = jnp.einsum('hqk,hkd->hqd', attn, kv,
                     preferred_element_type=jnp.float32)          # (H, tq, D) f32

    # Fused fc_out: w is pre-reshaped to (H, D, E_out); batched matmul + sum over
    # heads avoids transposing ctx back to (tq, H*D).
    w3 = w_ref[...]                                      # (H, D, Epad)
    proj = jnp.einsum('hqd,hdo->hqo', ctx.astype(w3.dtype), w3,
                      preferred_element_type=jnp.float32)         # (H, tq, Epad)
    out2d = jnp.sum(proj, axis=0) + b_ref[...]           # (tq, Epad), bias broadcast
    o_ref[...] = out2d.astype(o_ref.dtype)


def _pick_q_tile(seq_len):
    for t in (512, 256, 128):
        if seq_len % t == 0:
            return t
    return seq_len


# ---------------------------------------------------------------------------
# Wrapper
# ---------------------------------------------------------------------------
def self_attention_forward(values, keys, queries, mask, w_out, b_out, *,
                           heads, use_bf16=False, approx_recip=False):
    B, v_len, E = values.shape
    k_len, q_len = keys.shape[1], queries.shape[1]
    # Q == K == V == values in the original forward => all lengths must match.
    assert q_len == v_len and k_len == v_len, "q/k/v lengths must match (Q==K==V semantics)"
    D = E // heads
    assert D * heads == E, "Embed size must be divisible by heads"
    L = v_len

    tq = _pick_q_tile(L)
    num_q_tiles = L // tq
    Epad = 128 * ((E + 127) // 128)          # lane-dense output tile (unmasked vst)

    # One-time XLA-side layout prep (O(B*L*E) HBM pass, negligible vs attention):
    #   x as (B, H, L, D) so the kernel is purely heads-batched contractions,
    #   fc_out weight as (H, D, E_out) so no in-kernel transpose is needed.
    compute_dtype = jnp.bfloat16 if use_bf16 else values.dtype
    x_heads = values.reshape(B, L, heads, D).transpose(0, 2, 1, 3).astype(compute_dtype)
    w3 = w_out.reshape(E, heads, D).transpose(1, 2, 0).astype(compute_dtype)   # (H, D, E)
    b2 = b_out.astype(jnp.float32)
    if Epad != E:
        w3 = jnp.pad(w3, ((0, 0), (0, 0), (0, Epad - E)))
        b2 = jnp.pad(b2, (0, Epad - E))
    b2 = b2.reshape(1, Epad)

    scale = 1.0 / math.sqrt(E)
    has_mask = mask is not None

    inputs = [x_heads]
    in_specs = [pl.BlockSpec((None, heads, L, D), lambda b, qi: (b, 0, 0, 0))]  # K/V, qi-invariant
    if has_mask:
        m = mask
        if m.ndim == 2:
            m = m[None]
        mask_i8 = (m != 0).astype(jnp.int8)              # replace semantics: only ==0 matters
        if mask_i8.shape[0] == 1:
            mask_map = lambda b, qi: (0, qi, 0)          # batch-invariant: fetched once
        else:
            mask_map = lambda b, qi: (b, qi, 0)
        inputs.append(mask_i8)
        in_specs.append(pl.BlockSpec((None, tq, L), mask_map))
    inputs += [w3, b2]
    in_specs += [
        pl.BlockSpec((heads, D, Epad), lambda b, qi: (0, 0, 0)),   # fc_out weight, VMEM-resident
        pl.BlockSpec((1, Epad), lambda b, qi: (0, 0)),             # bias, VMEM-resident
    ]

    # Raise the scoped-VMEM limit only when the double-buffered footprint needs it
    # (cap at 64 MiB so v7x's smaller physical VMEM is respected).
    itemsize = jnp.dtype(compute_dtype).itemsize
    block_bytes = (heads * L * D * itemsize
                   + heads * D * Epad * itemsize
                   + Epad * 4
                   + tq * Epad * 4
                   + (tq * L if has_mask else 0))
    scratch_bytes = 4 * heads * tq * (3 * L + Epad)      # energy/exp/attn + proj estimate
    est = 2 * block_bytes + scratch_bytes
    cp_kwargs = dict(dimension_semantics=("parallel", "parallel"))
    if est > 32 * 1024 * 1024:
        cp_kwargs["vmem_limit_bytes"] = min(int(1.5 * est), 64 * 1024 * 1024)

    out = pl.pallas_call(
        functools.partial(_self_attn_kernel,
                          tq=tq, num_q_tiles=num_q_tiles, scale=scale,
                          has_mask=has_mask, approx_recip=approx_recip),
        out_shape=jax.ShapeDtypeStruct((B, L, Epad), values.dtype),
        grid=(B, num_q_tiles),
        in_specs=in_specs,
        out_specs=pl.BlockSpec((None, tq, Epad), lambda b, qi: (b, qi, 0)),
        compiler_params=pltpu.CompilerParams(**cp_kwargs),
    )(*inputs)

    return out[..., :E] if Epad != E else out


# ---------------------------------------------------------------------------
# Pure-JAX reference (mirrors the PyTorch forward exactly)
# ---------------------------------------------------------------------------
def _reference_forward(values, keys, queries, mask, w_out, b_out, *, heads):
    B, L, E = values.shape
    D = E // heads
    x = values.reshape(B, L, heads, D)
    q = k = v = x
    energy = jnp.einsum('bqhd,bkhd->bhqk', q, k)
    if mask is not None:
        m = mask if mask.ndim == 3 else mask[None]
        energy = jnp.where(m[:, None, :, :] == 0, jnp.float32(-1e20), energy)
    attn = jax.nn.softmax(energy / jnp.sqrt(jnp.float32(E)), axis=3)
    out = jnp.einsum('bhql,blhd->bqhd', attn, v).reshape(B, L, E)
    return out @ w_out.T + b_out


# ---------------------------------------------------------------------------
if __name__ == "__main__":
    B, L, E, H = 2, 8, 32, 8          # head_dim = 4
    key = jax.random.PRNGKey(0)
    k1, k2, k3, k4, k5 = jax.random.split(key, 5)

    values = jax.random.normal(k1, (B, L, E), dtype=jnp.float32)
    keys_in = jax.random.normal(k2, (B, L, E), dtype=jnp.float32)    # only shape is used
    queries_in = jax.random.normal(k3, (B, L, E), dtype=jnp.float32) # only shape is used

    # Only fc_out is applied in the PyTorch forward.
    # TODO(synk): self.values/self.keys/self.queries Linear weights exist in
    # __init__ but are never used in forward(), so they are omitted here.
    w_out = jax.random.normal(k4, (E, E), dtype=jnp.float32) * 0.1
    b_out = jax.random.normal(k5, (E,), dtype=jnp.float32) * 0.1

    # Deterministic causal mask per batch (int; kernel only checks == 0).
    mask = jnp.tril(jnp.ones((L, L), dtype=jnp.int32))[None].repeat(B, axis=0)

    # Exact f32 path (use_bf16/approx_recip stay False) so strict parity holds.
    out = self_attention_forward(values, keys_in, queries_in, mask,
                                 w_out, b_out, heads=H)
    out = jax.block_until_ready(out)

    ref = _reference_forward(values, keys_in, queries_in, mask,
                             w_out, b_out, heads=H)

    assert out.shape == (B, L, E)
    assert jnp.allclose(out, ref, rtol=1e-5, atol=1e-5)
    print("KERNEL_OK")
</pallas_src>

<mosaic_0001>
module attributes {stable_mosaic.version = 11 : i64} {
  func.func @_self_attn_kernel(%arg0: i32, %arg1: i32, %arg2: memref<1x8x8x4xf32, #tpu.memory_space<vmem>>, %arg3: memref<1x8x8xi8, #tpu.memory_space<vmem>>, %arg4: memref<8x4x128xf32, #tpu.memory_space<vmem>>, %arg5: memref<1x128xf32, #tpu.memory_space<vmem>>, %arg6: memref<1x8x128xf32, #tpu.memory_space<vmem>>) attributes {dimension_semantics = [#tpu.dimension_semantics<parallel>, #tpu.dimension_semantics<parallel>], iteration_bounds = array<i64: 2, 1>, scalar_prefetch = 0 : i64, scratch_operands = 0 : i64, tpu.core_type = #tpu.core_type<tc>, window_params = [{transform_indices = @transform_0, window_bounds = array<i64: 1, 8, 8, 4>}, {transform_indices = @transform_1, window_bounds = array<i64: 1, 8, 8>}, {pipeline_mode = #tpu.pipeline_mode<synchronous>, transform_indices = @transform_2, window_bounds = array<i64: 8, 4, 128>}, {pipeline_mode = #tpu.pipeline_mode<synchronous>, transform_indices = @transform_3, window_bounds = array<i64: 1, 128>}, {transform_indices = @transform_4, window_bounds = array<i64: 1, 8, 128>}]} {
    %c0 = arith.constant 0 : index
    %c0_0 = arith.constant 0 : index
    %c0_1 = arith.constant 0 : index
    %c0_2 = arith.constant 0 : index
    %0 = vector.load %arg2[%c0, %c0_0, %c0_1, %c0_2] : memref<1x8x8x4xf32, #tpu.memory_space<vmem>>, vector<1x8x8x4xf32>
    %1 = vector.shape_cast %0 : vector<1x8x8x4xf32> to vector<8x8x4xf32>
    "tpu.trace_start"() <{level = 10 : i32, message = "hqd,hkd->hqk"}> : () -> ()
    %cst = arith.constant dense<0.000000e+00> : vector<8x8x8xf32>
    %2 = tpu.matmul %1, %1, %cst {dimension_numbers = #tpu.dot_dimension_numbers<[2], [2], [1], [1], [0, 0, 0, 1, 1, 1], [0], [0]>} : vector<8x8x4xf32>, vector<8x8x4xf32>, vector<8x8x8xf32> -> vector<8x8x8xf32>
    "tpu.trace_stop"() : () -> ()
    %c0_3 = arith.constant 0 : index
    %c0_4 = arith.constant 0 : index
    %c0_5 = arith.constant 0 : index
    %3 = vector.load %arg3[%c0_3, %c0_4, %c0_5] : memref<1x8x8xi8, #tpu.memory_space<vmem>>, vector<1x8x8xi8>
    %4 = vector.shape_cast %3 : vector<1x8x8xi8> to vector<8x8xi8>
    %5 = arith.sitofp %4 : vector<8x8xi8> to vector<8x8xf32>
    %cst_6 = arith.constant 0.000000e+00 : f32
    %6 = vector.broadcast %cst_6 : f32 to vector<8x8xf32>
    %7 = arith.cmpf oeq, %5, %6 : vector<8x8xf32>
    %8 = vector.shape_cast %7 : vector<8x8xi1> to vector<1x8x8xi1>
    %cst_7 = arith.constant -1.000000e+20 : f32
    %9 = vector.shape_cast %8 : vector<1x8x8xi1> to vector<1x8x8xi1>
    %10 = vector.broadcast %9 : vector<1x8x8xi1> to vector<8x8x8xi1>
    %11 = vector.broadcast %cst_7 : f32 to vector<8x8x8xf32>
    %12 = arith.select %10, %11, %2 : vector<8x8x8xi1>, vector<8x8x8xf32>
    %cst_8 = arith.constant 0.176776692 : f32
    %13 = vector.broadcast %cst_8 : f32 to vector<8x8x8xf32>
    %14 = arith.mulf %12, %13 : vector<8x8x8xf32>
    %cst_9 = arith.constant dense<0xFF800000> : vector<8x8xf32>
    %15 = vector.multi_reduction <maximumf>, %14, %cst_9 [2] : vector<8x8x8xf32> to vector<8x8xf32>
    %16 = vector.shape_cast %15 : vector<8x8xf32> to vector<8x8x1xf32>
    %17 = vector.broadcast %16 : vector<8x8x1xf32> to vector<8x8x8xf32>
    %18 = arith.subf %14, %17 : vector<8x8x8xf32>
    %19 = math.exp %18 : vector<8x8x8xf32>
    %cst_10 = arith.constant dense<0.000000e+00> : vector<8x8xf32>
    %20 = vector.multi_reduction <add>, %19, %cst_10 [2] : vector<8x8x8xf32> to vector<8x8xf32>
    %21 = vector.shape_cast %20 : vector<8x8xf32> to vector<8x8x1xf32>
    %22 = tpu.reciprocal %21 : vector<8x8x1xf32> -> vector<8x8x1xf32>
    %23 = vector.broadcast %22 : vector<8x8x1xf32> to vector<8x8x8xf32>
    %24 = arith.mulf %19, %23 : vector<8x8x8xf32>
    "tpu.trace_start"() <{level = 10 : i32, message = "hqk,hkd->hqd"}> : () -> ()
    %cst_11 = arith.constant dense<0.000000e+00> : vector<8x8x4xf32>
    %25 = tpu.matmul %24, %1, %cst_11 {dimension_numbers = #tpu.dot_dimension_numbers<[2], [1], [1], [2], [0, 0, 0, 1, 1, 2], [0], [0]>} : vector<8x8x8xf32>, vector<8x8x4xf32>, vector<8x8x4xf32> -> vector<8x8x4xf32>
    "tpu.trace_stop"() : () -> ()
    %c0_12 = arith.constant 0 : index
    %c0_13 = arith.constant 0 : index
    %c0_14 = arith.constant 0 : index
    %26 = vector.load %arg4[%c0_12, %c0_13, %c0_14] : memref<8x4x128xf32, #tpu.memory_space<vmem>>, vector<8x4x128xf32>
    "tpu.trace_start"() <{level = 10 : i32, message = "hqd,hdo->hqo"}> : () -> ()
    %cst_15 = arith.constant dense<0.000000e+00> : vector<8x8x128xf32>
    %27 = tpu.matmul %25, %26, %cst_15 {dimension_numbers = #tpu.dot_dimension_numbers<[2], [1], [1], [2], [0, 0, 0, 1, 1, 2], [0], [0]>} : vector<8x8x4xf32>, vector<8x4x128xf32>, vector<8x8x128xf32> -> vector<8x8x128xf32>
    "tpu.trace_stop"() : () -> ()
    %cst_16 = arith.constant dense<0.000000e+00> : vector<8x128xf32>
    %28 = vector.multi_reduction <add>, %27, %cst_16 [0] : vector<8x8x128xf32> to vector<8x128xf32>
    %c0_17 = arith.constant 0 : index
    %c0_18 = arith.constant 0 : index
    %29 = vector.load %arg5[%c0_17, %c0_18] : memref<1x128xf32, #tpu.memory_space<vmem>>, vector<1x128xf32>
    %30 = vector.broadcast %29 : vector<1x128xf32> to vector<8x128xf32>
    %31 = arith.addf %28, %30 : vector<8x128xf32>
    %c0_19 = arith.constant 0 : index
    %c0_20 = arith.constant 0 : index
    %c0_21 = arith.constant 0 : index
    %32 = vector.load %arg6[%c0_19, %c0_20, %c0_21] : memref<1x8x128xf32, #tpu.memory_space<vmem>>, vector<1x8x128xf32>
    %33 = vector.shape_cast %32 : vector<1x8x128xf32> to vector<8x128xf32>
    %34 = vector.shape_cast %31 : vector<8x128xf32> to vector<1x8x128xf32>
    tpu.vector_store %arg6[%c0_19, %c0_20, %c0_21], %34 {strides = array<i32>} : memref<1x8x128xf32, #tpu.memory_space<vmem>>, vector<1x8x128xf32>,
    return
  }
  func.func @transform_0(%arg0: i32, %arg1: i32) -> (i32, i32, i32, i32) {
    %c0_i32 = arith.constant 0 : i32
    %c0_i32_0 = arith.constant 0 : i32
    %c0_i32_1 = arith.constant 0 : i32
    %c0_i32_2 = arith.constant 0 : i32
    return %arg0, %c0_i32, %c0_i32_0, %c0_i32_1 : i32, i32, i32, i32
  }
  func.func @transform_1(%arg0: i32, %arg1: i32) -> (i32, i32, i32) {
    %c0_i32 = arith.constant 0 : i32
    %c0_i32_0 = arith.constant 0 : i32
    return %arg0, %arg1, %c0_i32 : i32, i32, i32
  }
  func.func @transform_2(%arg0: i32, %arg1: i32) -> (i32, i32, i32) {
    %c0_i32 = arith.constant 0 : i32
    %c0_i32_0 = arith.constant 0 : i32
    %c0_i32_1 = arith.constant 0 : i32
    %c0_i32_2 = arith.constant 0 : i32
    return %c0_i32, %c0_i32_0, %c0_i32_1 : i32, i32, i32
  }
  func.func @transform_3(%arg0: i32, %arg1: i32) -> (i32, i32) {
    %c0_i32 = arith.constant 0 : i32
    %c0_i32_0 = arith.constant 0 : i32
    %c0_i32_1 = arith.constant 0 : i32
    return %c0_i32, %c0_i32_0 : i32, i32
  }
  func.func @transform_4(%arg0: i32, %arg1: i32) -> (i32, i32, i32) {
    %c0_i32 = arith.constant 0 : i32
    %c0_i32_0 = arith.constant 0 : i32
    return %arg0, %arg1, %c0_i32 : i32, i32, i32
  }
}

</mosaic_0001>

<llo_original>
// kernel: tpu_custom_call.1
$region0: #{tpu_custom_call.1}
  #allocation0 [shape = 'u32[]', space=smem, size = 0x4, offset = 0x4, fixed_abs, tag = 'smem constant byte address 0x4 - core index']
  #allocation1 [shape = 'u32[144,128]{1,0:T(1,128)}', space=vmem, size = 0x12000, scoped, tag = 'internal scratch']
  %s0 = inlined_call_operand.vmem [shape: f32[2,8,8,4], index: 0, kind: input, shape index: {}]
  %s1 = inlined_call_operand.vmem [shape: s8[2,8,8], index: 1, kind: input, shape index: {}]
  %s2 = inlined_call_operand.vmem [shape: f32[8,4,128], index: 2, kind: input, shape index: {}]
  %s3 = inlined_call_operand.vmem [shape: f32[1,128], index: 3, kind: input, shape index: {}]
  %s4 = inlined_call_operand.hbm [shape: f32[2,8,128], index: 4, kind: output, shape index: {}]
  %s5 = sld [smem:[#allocation0]]
  $region49: #{tpu_custom_call.1} parent=0
    _
  %s7 = ssub.s32 1, %s5
  %s8 = scalar_select 0, %s7, %s5
  $region1: #{tpu_custom_call.1} parent=0
    #allocation2 [shape = 'u8[8192]{0}', space=vmem, size = 0x2000, scoped, tag = 'output window, operand 0']
    #allocation3 [shape = 's32[2]{0}', space=sflag, size = 0x8, scoped, tag = 'scoped memory for tpu_custom_call.1']
    %9 = vsyncpa [#allocation3], 0
    %s10 = scalar_lea.sflag [#allocation3], 1
    %11 = vsyncpa %s10, 0
    loop: start=0, step=1, limit=4
    $region2: #{tpu_custom_call.1} parent=1 // loop_pre_header
      _
    $region3: #{tpu_custom_call.1} parent=1 // loop_header
      %s13 = sphi 0, %s17
      %p14 = scmp.ge.s32.totalorder %s13, 4
      %s20 = sphi 0, %s32
      %s21 = sphi 0, %s28
      %s22 = sphi 0, %s20
      %s23 = sphi 0, %s21
      %s24 = sphi 0, %s22
      %s25 = sphi 0, %s23
      %s35 = sphi 0, %s37
      %s38 = sphi 0, %s35
      %s39 = sphi 0, %s38
      %s55 = sphi 0, %s39
      %s63 = sphi 0, %s65
      %s66 = sphi 0, %s63
      %s67 = sphi 0, %s66
      %s83 = sphi 0, %s67
      %s87 = sphi 0, %s87
      %s89 = sphi 0, %s87
      %s90 = sphi 0, %s89
      %s104 = sphi 0, %s90
      %s108 = sphi 0, %s108
      %s110 = sphi 0, %s108
      %s111 = sphi 0, %s110
      %s125 = sphi 0, %s111
      %s133 = sphi 0, %s135
      %s136 = sphi 0, %s133
      %s137 = sphi 0, %s136
      %s153 = sphi 0, %s137
    $region4: #{tpu_custom_call.1} parent=1 // loop_header_branch
      %16 = sbr.rel (%p14) target = $region8
    $region5: #{tpu_custom_call.1} parent=1 // loop_body
      %s18 = ssub.s32 %s13, 1
      %s19 = ssub.s32 %s13, 2
      %s26 = sadd.s32 1, %s21
      %p27 = scmp.ge.s32.totalorder %s26, 1
      %s28 = scalar_select %p27, 0, %s26
      %s29 = sadd.s32 1, %s20
      %s30 = scalar_select %p27, %s29, %s20
      %p31 = scmp.ge.s32.totalorder %s30, 2
      %s32 = scalar_select %p31, 0, %s30
      %s33 = ssub.s32 %s20, %s32
      %p34 = scmp.eq.s32.totalorder %s33, 0
      %s36 = sadd.s32 %s35, 1
      %s37 = scalar_select %p34, %s35, %s36
      %p40 = pneg %p34
      %p41 = scmp.eq.s32.totalorder %s13, 1
      %p42 = por %p40, %p41
      %p43 = scmp.ne.s32.totalorder %s35, %s38
      %p44 = scmp.eq.s32.totalorder %s13, 0
      %p45 = por %p43, %p44
      %p46 = scmp.ne.s32.totalorder %s35, %s38
      %p47 = scmp.eq.s32.totalorder %s18, 1
      %p48 = por %p46, %p47
      %p49 = scmp.ne.s32.totalorder %s38, %s39
      %p50 = scmp.eq.s32.totalorder %s18, 0
      %p51 = por %p49, %p50
      %p52 = scmp.ne.s32.totalorder %s38, %s39
      %p53 = scmp.eq.s32.totalorder %s19, 1
      %p54 = por %p52, %p53
      %p56 = scmp.ne.s32.totalorder %s39, %s55
      %p57 = scmp.eq.s32.totalorder %s19, 0
      %p58 = por %p56, %p57
      %s59 = ssub.s32 %s20, %s32
      %s60 = ssub.s32 %s21, %s28
      %s61 = sor.u32 %s59, %s60
      %p62 = scmp.eq.s32.totalorder %s61, 0
      %s64 = sadd.s32 %s63, 1
      %s65 = scalar_select %p62, %s63, %s64
      %p68 = pneg %p62
      %p69 = scmp.eq.s32.totalorder %s13, 1
      %p70 = por %p68, %p69
      %p71 = scmp.ne.s32.totalorder %s63, %s66
      %p72 = scmp.eq.s32.totalorder %s13, 0
      %p73 = por %p71, %p72
      %p74 = scmp.ne.s32.totalorder %s63, %s66
      %p75 = scmp.eq.s32.totalorder %s18, 1
      %p76 = por %p74, %p75
      %p77 = scmp.ne.s32.totalorder %s66, %s67
      %p78 = scmp.eq.s32.totalorder %s18, 0
      %p79 = por %p77, %p78
      %p80 = scmp.ne.s32.totalorder %s66, %s67
      %p81 = scmp.eq.s32.totalorder %s19, 1
      %p82 = por %p80, %p81
      %p84 = scmp.ne.s32.totalorder %s67, %s83
      %p85 = scmp.eq.s32.totalorder %s19, 0
      %p86 = por %p84, %p85
      %s88 = sadd.s32 %s87, 1
      %p91 = scmp.eq.s32.totalorder %s13, 1
      %p92 = scmp.ne.s32.totalorder %s87, %s89
      %p93 = scmp.eq.s32.totalorder %s13, 0
      %p94 = por %p92, %p93
      %p95 = scmp.ne.s32.totalorder %s87, %s89
      %p96 = scmp.eq.s32.totalorder %s18, 1
      %p97 = por %p95, %p96
      %p98 = scmp.ne.s32.totalorder %s89, %s90
      %p99 = scmp.eq.s32.totalorder %s18, 0
      %p100 = por %p98, %p99
      %p101 = scmp.ne.s32.totalorder %s89, %s90
      %p102 = scmp.eq.s32.totalorder %s19, 1
      %p103 = por %p101, %p102
      %p105 = scmp.ne.s32.totalorder %s90, %s104
      %p106 = scmp.eq.s32.totalorder %s19, 0
      %p107 = por %p105, %p106
      %s109 = sadd.s32 %s108, 1
      %p112 = scmp.eq.s32.totalorder %s13, 1
      %p113 = scmp.ne.s32.totalorder %s108, %s110
      %p114 = scmp.eq.s32.totalorder %s13, 0
      %p115 = por %p113, %p114
      %p116 = scmp.ne.s32.totalorder %s108, %s110
      %p117 = scmp.eq.s32.totalorder %s18, 1
      %p118 = por %p116, %p117
      %p119 = scmp.ne.s32.totalorder %s110, %s111
      %p120 = scmp.eq.s32.totalorder %s18, 0
      %p121 = por %p119, %p120
      %p122 = scmp.ne.s32.totalorder %s110, %s111
      %p123 = scmp.eq.s32.totalorder %s19, 1
      %p124 = por %p122, %p123
      %p126 = scmp.ne.s32.totalorder %s111, %s125
      %p127 = scmp.eq.s32.totalorder %s19, 0
      %p128 = por %p126, %p127
      %s129 = ssub.s32 %s20, %s32
      %s130 = ssub.s32 %s21, %s28
      %s131 = sor.u32 %s129, %s130
      %p132 = scmp.eq.s32.totalorder %s131, 0
      %s134 = sadd.s32 %s133, 1
      %s135 = scalar_select %p132, %s133, %s134
      %p138 = pneg %p132
      %p139 = scmp.eq.s32.totalorder %s13, 1
      %p140 = por %p138, %p139
      %p141 = scmp.ne.s32.totalorder %s133, %s136
      %p142 = scmp.eq.s32.totalorder %s13, 0
      %p143 = por %p141, %p142
      %p144 = scmp.ne.s32.totalorder %s133, %s136
      %p145 = scmp.eq.s32.totalorder %s18, 1
      %p146 = por %p144, %p145
      %p147 = scmp.ne.s32.totalorder %s136, %s137
      %p148 = scmp.eq.s32.totalorder %s18, 0
      %p149 = por %p147, %p148
      %p150 = scmp.ne.s32.totalorder %s136, %s137
      %p151 = scmp.eq.s32.totalorder %s19, 1
      %p152 = por %p150, %p151
      %p154 = scmp.ne.s32.totalorder %s137, %s153
      %p155 = scmp.eq.s32.totalorder %s19, 0
      %p156 = por %p154, %p155
      %p157 = scmp.le.s32.totalorder 1, %s13
      %p158 = scmp.lt.s32.totalorder %s13, 3
      %p159 = pnand %p157, %p158
      %p160 = pneg %p159
      // Predicated region
      $region9: #{tpu_custom_call.1} parent=5 // pred_check
        _
      $region10: #{tpu_custom_call.1} parent=5 // pred_check_branch
        %162 = sbr.rel (%p159) target = $region12
      $region11: #{tpu_custom_call.1} parent=5 // pred_region
        %s163 = ssub.s32 %s13, 1
        // Predicated region
        $region13: #{tpu_custom_call.1} parent=11 // pred_check
          %p164 = pneg %p100
        $region14: #{tpu_custom_call.1} parent=11 // pred_check_branch
          %166 = sbr.rel (%p164) target = $region16
        $region15: #{tpu_custom_call.1} parent=11 // pred_region
          _
        $region16: #{tpu_custom_call.1} parent=11 // pred_fallthru
          _
        // Predicated region
        $region17: #{tpu_custom_call.1} parent=11 // pred_check
          %p167 = pneg %p121
        $region18: #{tpu_custom_call.1} parent=11 // pred_check_branch
          %169 = sbr.rel (%p167) target = $region20
        $region19: #{tpu_custom_call.1} parent=11 // pred_region
          _
        $region20: #{tpu_custom_call.1} parent=11 // pred_fallthru
          _
      $region12: #{tpu_custom_call.1} parent=5 // pred_fallthru
        _
      %p170 = scmp.lt.s32.totalorder %s13, 2
      // Predicated region
      $region21: #{tpu_custom_call.1} parent=5 // pred_check
        %p171 = pneg %p170
      $region22: #{tpu_custom_call.1} parent=5 // pred_check_branch
        %173 = sbr.rel (%p171) target = $region24
      $region23: #{tpu_custom_call.1} parent=5 // pred_region
        // Predicated region
        $region25: #{tpu_custom_call.1} parent=23 // pred_check
          %p174 = pneg %p45
        $region26: #{tpu_custom_call.1} parent=23 // pred_check_branch
          %176 = sbr.rel (%p174) target = $region28
        $region27: #{tpu_custom_call.1} parent=23 // pred_region
          %p177 = scmp.lt.s32.totalorder %s20, 1
          %s178 = scalar_select %p177, %s20, 1
          %s179 = smul.addr %s178, 8
          %s180 = smul.addr %s179, 8
          %s181 = scalar_lea.vmem %s0, %s180
        $region28: #{tpu_custom_call.1} parent=23 // pred_fallthru
          _
        // Predicated region
        $region29: #{tpu_custom_call.1} parent=23 // pred_check
          %p182 = pneg %p73
        $region30: #{tpu_custom_call.1} parent=23 // pred_check_branch
          %184 = sbr.rel (%p182) target = $region32
        $region31: #{tpu_custom_call.1} parent=23 // pred_region
          %p185 = scmp.lt.s32.totalorder %s20, 1
          %s186 = scalar_select %p185, %s20, 1
          %p187 = scmp.lt.s32.totalorder %s21, 0
          %s188 = scalar_select %p187, %s21, 0
          %s189 = sadd.s32 %s188, %s186
          %s190 = smul.addr %s189, 2
          %s191 = scalar_lea.vmem %s1, %s190
        $region32: #{tpu_custom_call.1} parent=23 // pred_fallthru
          _
      $region24: #{tpu_custom_call.1} parent=5 // pred_fallthru
        _
      %p192 = scmp.le.s32.totalorder 1, %s13
      %p193 = scmp.lt.s32.totalorder %s13, 3
      %p194 = pnand %p192, %p193
      %p195 = pneg %p194
      // Predicated region
      $region33: #{tpu_custom_call.1} parent=5 // pred_check
        _
      $region34: #{tpu_custom_call.1} parent=5 // pred_check_branch
        %197 = sbr.rel (%p194) target = $region36
      $region35: #{tpu_custom_call.1} parent=5 // pred_region
        %s198 = ssub.s32 %s13, 1
        %p199 = scmp.lt.s32.totalorder %s22, 1
        %s200 = scalar_select %p199, %s22, 1
        %s201 = smul.addr %s200, 8
        %s202 = smul.addr %s201, 8
        %s203 = scalar_lea.vmem %s0, %s202
        %p204 = pneg %p51
        %p205 = pneg %p48
        %p206 = scmp.lt.s32.totalorder %s22, 1
        %s207 = scalar_select %p206, %s22, 1
        %p208 = scmp.lt.s32.totalorder %s23, 0
        %s209 = scalar_select %p208, %s23, 0
        %s210 = sadd.s32 %s209, %s207
        %s211 = smul.addr %s210, 2
        %s212 = scalar_lea.vmem %s1, %s211
        %p213 = pneg %p79
        %p214 = pneg %p76
        %p215 = pneg %p100
        %p216 = pneg %p97
        %p217 = pneg %p121
        %p218 = pneg %p118
        %p219 = pneg %p149
        %p220 = pneg %p146
        %s221 = sand.u32 %s136, 1
        %s222 = scalar_lea.sflag [#allocation3], %s221
        %s223 = sand.u32 %s136, 1
        %s224 = smul.addr %s223, 8
        %s225 = scalar_lea.vmem [#allocation2], %s224
        %p226 = scmp.lt.s32.totalorder %s22, 1
        %s227 = scalar_select %p226, %s22, 1
        %s228 = smul.addr %s227, 8
        %s229 = smul.addr %s228, 8
        %s230 = scalar_lea.vmem %s0, %s229
        %p231 = scmp.lt.s32.totalorder %s22, 1
        %s232 = scalar_select %p231, %s22, 1
        %p233 = scmp.lt.s32.totalorder %s23, 0
        %s234 = scalar_select %p233, %s23, 0
        %s235 = sadd.s32 %s234, %s232
        %s236 = smul.addr %s235, 2
        %s237 = scalar_lea.vmem %s1, %s236
        %v238 = vld [vmem:[%s230] sm:$0xff]
        %v239 = vld [vmem:[%s230 + $0x8] sm:$0xff]
        %v240 = vld [vmem:[%s230 + $0x10] sm:$0xff]
        %v241 = vld [vmem:[%s230 + $0x18] sm:$0xff]
        %v242 = vld [vmem:[%s230 + $0x20] sm:$0xff]
        %v243 = vld [vmem:[%s230 + $0x28] sm:$0xff]
        %v244 = vld [vmem:[%s230 + $0x30] sm:$0xff]
        %v245 = vld [vmem:[%s230 + $0x38] sm:$0xff]
        %vm246 = vcmask 31744
        %v248 = vsel %vm246, %v238, 0
        %250 = vmatprep.subr.mxu0 0.0
        %251 = vmatpush1.xpose.msra.mxu0 %v248
        %252 = vmatprep.subr.mxu0 0.0
        %253 = vmatpush1.xpose.msra.mxu0 0.0
        %254 = vmatprep.subr.mxu0 0.0
        %255 = vmatpush1.xpose.msra.mxu0 0.0
        %256 = vmatprep.subr.mxu0 0.0
        %257 = vmatpush1.xpose.msra.mxu0 0.0
        %258 = vmatprep.subr.mxu0 0.0
        %259 = vmatpush1.xpose.msra.mxu0 0.0
        %260 = vmatprep.subr.mxu0 0.0
        %261 = vmatpush1.xpose.msra.mxu0 0.0
        %262 = vmatprep.subr.mxu0 0.0
        %263 = vmatpush1.xpose.msra.mxu0 0.0
        %264 = vmatprep.subr.mxu0 0.0
        %265 = vmatpush1.xpose.msra.mxu0 0.0
        %266 = vmatprep.subr.mxu0 0.0
        %267 = vmatpush1.xpose.msra.mxu0 0.0
        %268 = vmatprep.subr.mxu0 0.0
        %269 = vmatpush1.xpose.msra.mxu0 0.0
        %270 = vmatprep.subr.mxu0 0.0
        %271 = vmatpush1.xpose.msra.mxu0 0.0
        %272 = vmatprep.subr.mxu0 0.0
        %273 = vmatpush1.xpose.msra.mxu0 0.0
        %274 = vmatprep.subr.mxu0 0.0
        %275 = vmatpush1.xpose.msra.mxu0 0.0
        %276 = vmatprep.subr.mxu0 0.0
        %277 = vmatpush1.xpose.msra.mxu0 0.0
        %278 = vmatprep.subr.mxu0 0.0
        %279 = vmatpush1.xpose.msra.mxu0 0.0
        %280 = vmatprep.subr.mxu0 0.0
        %281 = vmatpush1.xpose.msra.mxu0 0.0
        %282 = vmatprep.subr.mxu0 0.0
        %283 = vmatpush1.xpose.msra.mxu0 0.0
        %284 = vmatprep.subr.mxu0 0.0
        %285 = vmatpush1.xpose.msra.mxu0 0.0
        %286 = vmatprep.subr.mxu0 0.0
        %287 = vmatpush1.xpose.msra.mxu0 0.0
        %288 = vmatprep.subr.mxu0 0.0
        %289 = vmatpush1.xpose.msra.mxu0 0.0
        %290 = vmatprep.subr.mxu0 0.0
        %291 = vmatpush1.xpose.msra.mxu0 0.0
        %292 = vmatprep.subr.mxu0 0.0
        %293 = vmatpush1.xpose.msra.mxu0 0.0
        %294 = vmatprep.subr.mxu0 0.0
        %295 = vmatpush1.xpose.msra.mxu0 0.0
        %296 = vmatprep.subr.mxu0 0.0
        %297 = vmatpush1.xpose.msra.mxu0 0.0
        %298 = vmatprep.subr.mxu0 0.0
        %299 = vmatpush1.xpose.msra.mxu0 0.0
        %300 = vmatprep.subr.mxu0 0.0
        %301 = vmatpush1.xpose.msra.mxu0 0.0
        %302 = vmatprep.subr.mxu0 0.0
        %303 = vmatpush1.xpose.msra.mxu0 0.0
        %304 = vmatprep.subr.mxu0 0.0
        %305 = vmatpush1.xpose.msra.mxu0 0.0
        %306 = vmatprep.subr.mxu0 0.0
        %307 = vmatpush1.xpose.msra.mxu0 0.0
        %308 = vmatprep.subr.mxu0 0.0
        %309 = vmatpush1.xpose.msra.mxu0 0.0
        %310 = vmatprep.subr.mxu0 0.0
        %311 = vmatpush1.xpose.msra.mxu0 0.0
        %312 = vmatprep.subr.mxu0 0.0
        %313 = vmatpush1.xpose.msra.mxu0 0.0
        %314 = vmatprep.mubr.f32.mxu0 0.0
        %315 = vmatmul.mubr.f32.gmra.mrb[0].mxu0 %v248
        %v316 = vpop.f32.mrb[0].mxu0
        %v317 = vadd.f32 0.0, %v316
        %v318 = vpop.f32.mrb[0].mxu0
        %319 = vdwg.mxu0
        %v321 = vsel %vm246, %v239, 0
        %323 = vmatprep.subr.mxu0 0.0
        %324 = vmatpush1.xpose.msra.mxu0 %v321
        %325 = vmatprep.subr.mxu0 0.0
        %326 = vmatpush1.xpose.msra.mxu0 0.0
        %327 = vmatprep.subr.mxu0 0.0
        %328 = vmatpush1.xpose.msra.mxu0 0.0
        %329 = vmatprep.subr.mxu0 0.0
        %330 = vmatpush1.xpose.msra.mxu0 0.0
        %331 = vmatprep.subr.mxu0 0.0
        %332 = vmatpush1.xpose.msra.mxu0 0.0
        %333 = vmatprep.subr.mxu0 0.0
        %334 = vmatpush1.xpose.msra.mxu0 0.0
        %335 = vmatprep.subr.mxu0 0.0
        %336 = vmatpush1.xpose.msra.mxu0 0.0
        %337 = vmatprep.subr.mxu0 0.0
        %338 = vmatpush1.xpose.msra.mxu0 0.0
        %339 = vmatprep.subr.mxu0 0.0
        %340 = vmatpush1.xpose.msra.mxu0 0.0
        %341 = vmatprep.subr.mxu0 0.0
        %342 = vmatpush1.xpose.msra.mxu0 0.0
        %343 = vmatprep.subr.mxu0 0.0
        %344 = vmatpush1.xpose.msra.mxu0 0.0
        %345 = vmatprep.subr.mxu0 0.0
        %346 = vmatpush1.xpose.msra.mxu0 0.0
        %347 = vmatprep.subr.mxu0 0.0
        %348 = vmatpush1.xpose.msra.mxu0 0.0
        %349 = vmatprep.subr.mxu0 0.0
        %350 = vmatpush1.xpose.msra.mxu0 0.0
        %351 = vmatprep.subr.mxu0 0.0
        %352 = vmatpush1.xpose.msra.mxu0 0.0
        %353 = vmatprep.subr.mxu0 0.0
        %354 = vmatpush1.xpose.msra.mxu0 0.0
        %355 = vmatprep.subr.mxu0 0.0
        %356 = vmatpush1.xpose.msra.mxu0 0.0
        %357 = vmatprep.subr.mxu0 0.0
        %358 = vmatpush1.xpose.msra.mxu0 0.0
        %359 = vmatprep.subr.mxu0 0.0
        %360 = vmatpush1.xpose.msra.mxu0 0.0
        %361 = vmatprep.subr.mxu0 0.0
        %362 = vmatpush1.xpose.msra.mxu0 0.0
        %363 = vmatprep.subr.mxu0 0.0
        %364 = vmatpush1.xpose.msra.mxu0 0.0
        %365 = vmatprep.subr.mxu0 0.0
        %366 = vmatpush1.xpose.msra.mxu0 0.0
        %367 = vmatprep.subr.mxu0 0.0
        %368 = vmatpush1.xpose.msra.mxu0 0.0
        %369 = vmatprep.subr.mxu0 0.0
        %370 = vmatpush1.xpose.msra.mxu0 0.0
        %371 = vmatprep.subr.mxu0 0.0
        %372 = vmatpush1.xpose.msra.mxu0 0.0
        %373 = vmatprep.subr.mxu0 0.0
        %374 = vmatpush1.xpose.msra.mxu0 0.0
        %375 = vmatprep.subr.mxu0 0.0
        %376 = vmatpush1.xpose.msra.mxu0 0.0
        %377 = vmatprep.subr.mxu0 0.0
        %378 = vmatpush1.xpose.msra.mxu0 0.0
        %379 = vmatprep.subr.mxu0 0.0
        %380 = vmatpush1.xpose.msra.mxu0 0.0
        %381 = vmatprep.subr.mxu0 0.0
        %382 = vmatpush1.xpose.msra.mxu0 0.0
        %383 = vmatprep.subr.mxu0 0.0
        %384 = vmatpush1.xpose.msra.mxu0 0.0
        %385 = vmatprep.subr.mxu0 0.0
        %386 = vmatpush1.xpose.msra.mxu0 0.0
        %387 = vmatprep.mubr.f32.mxu0 0.0
        %388 = vmatmul.mubr.f32.gmra.mrb[0].mxu0 %v321
        %v389 = vpop.f32.mrb[0].mxu0
        %v390 = vadd.f32 0.0, %v389
        %v391 = vpop.f32.mrb[0].mxu0
        %392 = vdwg.mxu0
        %v394 = vsel %vm246, %v240, 0
        %396 = vmatprep.subr.mxu0 0.0
        %397 = vmatpush1.xpose.msra.mxu0 %v394
        %398 = vmatprep.subr.mxu0 0.0
        %399 = vmatpush1.xpose.msra.mxu0 0.0
        %400 = vmatprep.subr.mxu0 0.0
        %401 = vmatpush1.xpose.msra.mxu0 0.0
        %402 = vmatprep.subr.mxu0 0.0
        %403 = vmatpush1.xpose.msra.mxu0 0.0
        %404 = vmatprep.subr.mxu0 0.0
        %405 = vmatpush1.xpose.msra.mxu0 0.0
        %406 = vmatprep.subr.mxu0 0.0
        %407 = vmatpush1.xpose.msra.mxu0 0.0
        %408 = vmatprep.subr.mxu0 0.0
        %409 = vmatpush1.xpose.msra.mxu0 0.0
        %410 = vmatprep.subr.mxu0 0.0
        %411 = vmatpush1.xpose.msra.mxu0 0.0
        %412 = vmatprep.subr.mxu0 0.0
        %413 = vmatpush1.xpose.msra.mxu0 0.0
        %414 = vmatprep.subr.mxu0 0.0
        %415 = vmatpush1.xpose.msra.mxu0 0.0
        %416 = vmatprep.subr.mxu0 0.0
        %417 = vmatpush1.xpose.msra.mxu0 0.0
        %418 = vmatprep.subr.mxu0 0.0
        %419 = vmatpush1.xpose.msra.mxu0 0.0
        %420 = vmatprep.subr.mxu0 0.0
        %421 = vmatpush1.xpose.msra.mxu0 0.0
        %422 = vmatprep.subr.mxu0 0.0
        %423 = vmatpush1.xpose.msra.mxu0 0.0
        %424 = vmatprep.subr.mxu0 0.0
        %425 = vmatpush1.xpose.msra.mxu0 0.0
        %426 = vmatprep.subr.mxu0 0.0
        %427 = vmatpush1.xpose.msra.mxu0 0.0
        %428 = vmatprep.subr.mxu0 0.0
        %429 = vmatpush1.xpose.msra.mxu0 0.0
        %430 = vmatprep.subr.mxu0 0.0
        %431 = vmatpush1.xpose.msra.mxu0 0.0
        %432 = vmatprep.subr.mxu0 0.0
        %433 = vmatpush1.xpose.msra.mxu0 0.0
        %434 = vmatprep.subr.mxu0 0.0
        %435 = vmatpush1.xpose.msra.mxu0 0.0
        %436 = vmatprep.subr.mxu0 0.0
        %437 = vmatpush1.xpose.msra.mxu0 0.0
        %438 = vmatprep.subr.mxu0 0.0
        %439 = vmatpush1.xpose.msra.mxu0 0.0
        %440 = vmatprep.subr.mxu0 0.0
        %441 = vmatpush1.xpose.msra.mxu0 0.0
        %442 = vmatprep.subr.mxu0 0.0
        %443 = vmatpush1.xpose.msra.mxu0 0.0
        %444 = vmatprep.subr.mxu0 0.0
        %445 = vmatpush1.xpose.msra.mxu0 0.0
        %446 = vmatprep.subr.mxu0 0.0
        %447 = vmatpush1.xpose.msra.mxu0 0.0
        %448 = vmatprep.subr.mxu0 0.0
        %449 = vmatpush1.xpose.msra.mxu0 0.0
        %450 = vmatprep.subr.mxu0 0.0
        %451 = vmatpush1.xpose.msra.mxu0 0.0
        %452 = vmatprep.subr.mxu0 0.0
        %453 = vmatpush1.xpose.msra.mxu0 0.0
        %454 = vmatprep.subr.mxu0 0.0
        %455 = vmatpush1.xpose.msra.mxu0 0.0
        %456 = vmatprep.subr.mxu0 0.0
        %457 = vmatpush1.xpose.msra.mxu0 0.0
        %458 = vmatprep.subr.mxu0 0.0
        %459 = vmatpush1.xpose.msra.mxu0 0.0
        %460 = vmatprep.mubr.f32.mxu0 0.0
        %461 = vmatmul.mubr.f32.gmra.mrb[0].mxu0 %v394
        %v462 = vpop.f32.mrb[0].mxu0
        %v463 = vadd.f32 0.0, %v462
        %v464 = vpop.f32.mrb[0].mxu0
        %465 = vdwg.mxu0
        %v467 = vsel %vm246, %v241, 0
        %469 = vmatprep.subr.mxu0 0.0
        %470 = vmatpush1.xpose.msra.mxu0 %v467
        %471 = vmatprep.subr.mxu0 0.0
        %472 = vmatpush1.xpose.msra.mxu0 0.0
        %473 = vmatprep.subr.mxu0 0.0
        %474 = vmatpush1.xpose.msra.mxu0 0.0
        %475 = vmatprep.subr.mxu0 0.0
        %476 = vmatpush1.xpose.msra.mxu0 0.0
        %477 = vmatprep.subr.mxu0 0.0
        %478 = vmatpush1.xpose.msra.mxu0 0.0
        %479 = vmatprep.subr.mxu0 0.0
        %480 = vmatpush1.xpose.msra.mxu0 0.0
        %481 = vmatprep.subr.mxu0 0.0
        %482 = vmatpush1.xpose.msra.mxu0 0.0
        %483 = vmatprep.subr.mxu0 0.0
        %484 = vmatpush1.xpose.msra.mxu0 0.0
        %485 = vmatprep.subr.mxu0 0.0
        %486 = vmatpush1.xpose.msra.mxu0 0.0
        %487 = vmatprep.subr.mxu0 0.0
        %488 = vmatpush1.xpose.msra.mxu0 0.0
        %489 = vmatprep.subr.mxu0 0.0
        %490 = vmatpush1.xpose.msra.mxu0 0.0
        %491 = vmatprep.subr.mxu0 0.0
        %492 = vmatpush1.xpose.msra.mxu0 0.0
        %493 = vmatprep.subr.mxu0 0.0
        %494 = vmatpush1.xpose.msra.mxu0 0.0
        %495 = vmatprep.subr.mxu0 0.0
        %496 = vmatpush1.xpose.msra.mxu0 0.0
        %497 = vmatprep.subr.mxu0 0.0
        %498 = vmatpush1.xpose.msra.mxu0 0.0
        %499 = vmatprep.subr.mxu0 0.0
        %500 = vmatpush1.xpose.msra.mxu0 0.0
        %501 = vmatprep.subr.mxu0 0.0
        %502 = vmatpush1.xpose.msra.mxu0 0.0
        %503 = vmatprep.subr.mxu0 0.0
        %504 = vmatpush1.xpose.msra.mxu0 0.0
        %505 = vmatprep.subr.mxu0 0.0
        %506 = vmatpush1.xpose.msra.mxu0 0.0
        %507 = vmatprep.subr.mxu0 0.0
        %508 = vmatpush1.xpose.msra.mxu0 0.0
        %509 = vmatprep.subr.mxu0 0.0
        %510 = vmatpush1.xpose.msra.mxu0 0.0
        %511 = vmatprep.subr.mxu0 0.0
        %512 = vmatpush1.xpose.msra.mxu0 0.0
        %513 = vmatprep.subr.mxu0 0.0
        %514 = vmatpush1.xpose.msra.mxu0 0.0
        %515 = vmatprep.subr.mxu0 0.0
        %516 = vmatpush1.xpose.msra.mxu0 0.0
        %517 = vmatprep.subr.mxu0 0.0
        %518 = vmatpush1.xpose.msra.mxu0 0.0
        %519 = vmatprep.subr.mxu0 0.0
        %520 = vmatpush1.xpose.msra.mxu0 0.0
        %521 = vmatprep.subr.mxu0 0.0
        %522 = vmatpush1.xpose.msra.mxu0 0.0
        %523 = vmatprep.subr.mxu0 0.0
        %524 = vmatpush1.xpose.msra.mxu0 0.0
        %525 = vmatprep.subr.mxu0 0.0
        %526 = vmatpush1.xpose.msra.mxu0 0.0
        %527 = vmatprep.subr.mxu0 0.0
        %528 = vmatpush1.xpose.msra.mxu0 0.0
        %529 = vmatprep.subr.mxu0 0.0
        %530 = vmatpush1.xpose.msra.mxu0 0.0
        %531 = vmatprep.subr.mxu0 0.0
        %532 = vmatpush1.xpose.msra.mxu0 0.0
        %533 = vmatprep.mubr.f32.mxu0 0.0
        %534 = vmatmul.mubr.f32.gmra.mrb[0].mxu0 %v467
        %v535 = vpop.f32.mrb[0].mxu0
        %v536 = vadd.f32 0.0, %v535
        %v537 = vpop.f32.mrb[0].mxu0
        %538 = vdwg.mxu0
        %v540 = vsel %vm246, %v242, 0
        %542 = vmatprep.subr.mxu0 0.0
        %543 = vmatpush1.xpose.msra.mxu0 %v540
        %544 = vmatprep.subr.mxu0 0.0
        %545 = vmatpush1.xpose.msra.mxu0 0.0
        %546 = vmatprep.subr.mxu0 0.0
        %547 = vmatpush1.xpose.msra.mxu0 0.0
        %548 = vmatprep.subr.mxu0 0.0
        %549 = vmatpush1.xpose.msra.mxu0 0.0
        %550 = vmatprep.subr.mxu0 0.0
        %551 = vmatpush1.xpose.msra.mxu0 0.0
        %552 = vmatprep.subr.mxu0 0.0
        %553 = vmatpush1.xpose.msra.mxu0 0.0
        %554 = vmatprep.subr.mxu0 0.0
        %555 = vmatpush1.xpose.msra.mxu0 0.0
        %556 = vmatprep.subr.mxu0 0.0
        %557 = vmatpush1.xpose.msra.mxu0 0.0
        %558 = vmatprep.subr.mxu0 0.0
        %559 = vmatpush1.xpose.msra.mxu0 0.0
        %560 = vmatprep.subr.mxu0 0.0
        %561 = vmatpush1.xpose.msra.mxu0 0.0
        %562 = vmatprep.subr.mxu0 0.0
        %563 = vmatpush1.xpose.msra.mxu0 0.0
        %564 = vmatprep.subr.mxu0 0.0
        %565 = vmatpush1.xpose.msra.mxu0 0.0
        %566 = vmatprep.subr.mxu0 0.0
        %567 = vmatpush1.xpose.msra.mxu0 0.0
        %568 = vmatprep.subr.mxu0 0.0
        %569 = vmatpush1.xpose.msra.mxu0 0.0
        %570 = vmatprep.subr.mxu0 0.0
        %571 = vmatpush1.xpose.msra.mxu0 0.0
        %572 = vmatprep.subr.mxu0 0.0
        %573 = vmatpush1.xpose.msra.mxu0 0.0
        %574 = vmatprep.subr.mxu0 0.0
        %575 = vmatpush1.xpose.msra.mxu0 0.0
        %576 = vmatprep.subr.mxu0 0.0
        %577 = vmatpush1.xpose.msra.mxu0 0.0
        %578 = vmatprep.subr.mxu0 0.0
        %579 = vmatpush1.xpose.msra.mxu0 0.0
        %580 = vmatprep.subr.mxu0 0.0
        %581 = vmatpush1.xpose.msra.mxu0 0.0
        %582 = vmatprep.subr.mxu0 0.0
        %583 = vmatpush1.xpose.msra.mxu0 0.0
        %584 = vmatprep.subr.mxu0 0.0
        %585 = vmatpush1.xpose.msra.mxu0 0.0
        %586 = vmatprep.subr.mxu0 0.0
        %587 = vmatpush1.xpose.msra.mxu0 0.0
        %588 = vmatprep.subr.mxu0 0.0
        %589 = vmatpush1.xpose.msra.mxu0 0.0
        %590 = vmatprep.subr.mxu0 0.0
        %591 = vmatpush1.xpose.msra.mxu0 0.0
        %592 = vmatprep.subr.mxu0 0.0
        %593 = vmatpush1.xpose.msra.mxu0 0.0
        %594 = vmatprep.subr.mxu0 0.0
        %595 = vmatpush1.xpose.msra.mxu0 0.0
        %596 = vmatprep.subr.mxu0 0.0
        %597 = vmatpush1.xpose.msra.mxu0 0.0
        %598 = vmatprep.subr.mxu0 0.0
        %599 = vmatpush1.xpose.msra.mxu0 0.0
        %600 = vmatprep.subr.mxu0 0.0
        %601 = vmatpush1.xpose.msra.mxu0 0.0
        %602 = vmatprep.subr.mxu0 0.0
        %603 = vmatpush1.xpose.msra.mxu0 0.0
        %604 = vmatprep.subr.mxu0 0.0
        %605 = vmatpush1.xpose.msra.mxu0 0.0
        %606 = vmatprep.mubr.f32.mxu0 0.0
        %607 = vmatmul.mubr.f32.gmra.mrb[0].mxu0 %v540
        %v608 = vpop.f32.mrb[0].mxu0
        %v609 = vadd.f32 0.0, %v608
        %v610 = vpop.f32.mrb[0].mxu0
        %611 = vdwg.mxu0
        %v613 = vsel %vm246, %v243, 0
        %615 = vmatprep.subr.mxu0 0.0
        %616 = vmatpush1.xpose.msra.mxu0 %v613
        %617 = vmatprep.subr.mxu0 0.0
        %618 = vmatpush1.xpose.msra.mxu0 0.0
        %619 = vmatprep.subr.mxu0 0.0
        %620 = vmatpush1.xpose.msra.mxu0 0.0
        %621 = vmatprep.subr.mxu0 0.0
        %622 = vmatpush1.xpose.msra.mxu0 0.0
        %623 = vmatprep.subr.mxu0 0.0
        %624 = vmatpush1.xpose.msra.mxu0 0.0
        %625 = vmatprep.subr.mxu0 0.0
        %626 = vmatpush1.xpose.msra.mxu0 0.0
        %627 = vmatprep.subr.mxu0 0.0
        %628 = vmatpush1.xpose.msra.mxu0 0.0
        %629 = vmatprep.subr.mxu0 0.0
        %630 = vmatpush1.xpose.msra.mxu0 0.0
        %631 = vmatprep.subr.mxu0 0.0
        %632 = vmatpush1.xpose.msra.mxu0 0.0
        %633 = vmatprep.subr.mxu0 0.0
        %634 = vmatpush1.xpose.msra.mxu0 0.0
        %635 = vmatprep.subr.mxu0 0.0
        %636 = vmatpush1.xpose.msra.mxu0 0.0
        %637 = vmatprep.subr.mxu0 0.0
        %638 = vmatpush1.xpose.msra.mxu0 0.0
        %639 = vmatprep.subr.mxu0 0.0
        %640 = vmatpush1.xpose.msra.mxu0 0.0
        %641 = vmatprep.subr.mxu0 0.0
        %642 = vmatpush1.xpose.msra.mxu0 0.0
        %643 = vmatprep.subr.mxu0 0.0
        %644 = vmatpush1.xpose.msra.mxu0 0.0
        %645 = vmatprep.subr.mxu0 0.0
        %646 = vmatpush1.xpose.msra.mxu0 0.0
        %647 = vmatprep.subr.mxu0 0.0
        %648 = vmatpush1.xpose.msra.mxu0 0.0
        %649 = vmatprep.subr.mxu0 0.0
        %650 = vmatpush1.xpose.msra.mxu0 0.0
        %651 = vmatprep.subr.mxu0 0.0
        %652 = vmatpush1.xpose.msra.mxu0 0.0
        %653 = vmatprep.subr.mxu0 0.0
        %654 = vmatpush1.xpose.msra.mxu0 0.0
        %655 = vmatprep.subr.mxu0 0.0
        %656 = vmatpush1.xpose.msra.mxu0 0.0
        %657 = vmatprep.subr.mxu0 0.0
        %658 = vmatpush1.xpose.msra.mxu0 0.0
        %659 = vmatprep.subr.mxu0 0.0
        %660 = vmatpush1.xpose.msra.mxu0 0.0
        %661 = vmatprep.subr.mxu0 0.0
        %662 = vmatpush1.xpose.msra.mxu0 0.0
        %663 = vmatprep.subr.mxu0 0.0
        %664 = vmatpush1.xpose.msra.mxu0 0.0
        %665 = vmatprep.subr.mxu0 0.0
        %666 = vmatpush1.xpose.msra.mxu0 0.0
        %667 = vmatprep.subr.mxu0 0.0
        %668 = vmatpush1.xpose.msra.mxu0 0.0
        %669 = vmatprep.subr.mxu0 0.0
        %670 = vmatpush1.xpose.msra.mxu0 0.0
        %671 = vmatprep.subr.mxu0 0.0
        %672 = vmatpush1.xpose.msra.mxu0 0.0
        %673 = vmatprep.subr.mxu0 0.0
        %674 = vmatpush1.xpose.msra.mxu0 0.0
        %675 = vmatprep.subr.mxu0 0.0
        %676 = vmatpush1.xpose.msra.mxu0 0.0
        %677 = vmatprep.subr.mxu0 0.0
        %678 = vmatpush1.xpose.msra.mxu0 0.0
        %679 = vmatprep.mubr.f32.mxu0 0.0
        %680 = vmatmul.mubr.f32.gmra.mrb[0].mxu0 %v613
        %v681 = vpop.f32.mrb[0].mxu0
        %v682 = vadd.f32 0.0, %v681
        %v683 = vpop.f32.mrb[0].mxu0
        %684 = vdwg.mxu0
        %v686 = vsel %vm246, %v244, 0
        %688 = vmatprep.subr.mxu0 0.0
        %689 = vmatpush1.xpose.msra.mxu0 %v686
        %690 = vmatprep.subr.mxu0 0.0
        %691 = vmatpush1.xpose.msra.mxu0 0.0
        %692 = vmatprep.subr.mxu0 0.0
        %693 = vmatpush1.xpose.msra.mxu0 0.0
        %694 = vmatprep.subr.mxu0 0.0
        %695 = vmatpush1.xpose.msra.mxu0 0.0
        %696 = vmatprep.subr.mxu0 0.0
        %697 = vmatpush1.xpose.msra.mxu0 0.0
        %698 = vmatprep.subr.mxu0 0.0
        %699 = vmatpush1.xpose.msra.mxu0 0.0
        %700 = vmatprep.subr.mxu0 0.0
        %701 = vmatpush1.xpose.msra.mxu0 0.0
        %702 = vmatprep.subr.mxu0 0.0
        %703 = vmatpush1.xpose.msra.mxu0 0.0
        %704 = vmatprep.subr.mxu0 0.0
        %705 = vmatpush1.xpose.msra.mxu0 0.0
        %706 = vmatprep.subr.mxu0 0.0
        %707 = vmatpush1.xpose.msra.mxu0 0.0
        %708 = vmatprep.subr.mxu0 0.0
        %709 = vmatpush1.xpose.msra.mxu0 0.0
        %710 = vmatprep.subr.mxu0 0.0
        %711 = vmatpush1.xpose.msra.mxu0 0.0
        %712 = vmatprep.subr.mxu0 0.0
        %713 = vmatpush1.xpose.msra.mxu0 0.0
        %714 = vmatprep.subr.mxu0 0.0
        %715 = vmatpush1.xpose.msra.mxu0 0.0
        %716 = vmatprep.subr.mxu0 0.0
        %717 = vmatpush1.xpose.msra.mxu0 0.0
        %718 = vmatprep.subr.mxu0 0.0
        %719 = vmatpush1.xpose.msra.mxu0 0.0
        %720 = vmatprep.subr.mxu0 0.0
        %721 = vmatpush1.xpose.msra.mxu0 0.0
        %722 = vmatprep.subr.mxu0 0.0
        %723 = vmatpush1.xpose.msra.mxu0 0.0
        %724 = vmatprep.subr.mxu0 0.0
        %725 = vmatpush1.xpose.msra.mxu0 0.0
        %726 = vmatprep.subr.mxu0 0.0
        %727 = vmatpush1.xpose.msra.mxu0 0.0
        %728 = vmatprep.subr.mxu0 0.0
        %729 = vmatpush1.xpose.msra.mxu0 0.0
        %730 = vmatprep.subr.mxu0 0.0
        %731 = vmatpush1.xpose.msra.mxu0 0.0
        %732 = vmatprep.subr.mxu0 0.0
        %733 = vmatpush1.xpose.msra.mxu0 0.0
        %734 = vmatprep.subr.mxu0 0.0
        %735 = vmatpush1.xpose.msra.mxu0 0.0
        %736 = vmatprep.subr.mxu0 0.0
        %737 = vmatpush1.xpose.msra.mxu0 0.0
        %738 = vmatprep.subr.mxu0 0.0
        %739 = vmatpush1.xpose.msra.mxu0 0.0
        %740 = vmatprep.subr.mxu0 0.0
        %741 = vmatpush1.xpose.msra.mxu0 0.0
        %742 = vmatprep.subr.mxu0 0.0
        %743 = vmatpush1.xpose.msra.mxu0 0.0
        %744 = vmatprep.subr.mxu0 0.0
        %745 = vmatpush1.xpose.msra.mxu0 0.0
        %746 = vmatprep.subr.mxu0 0.0
        %747 = vmatpush1.xpose.msra.mxu0 0.0
        %748 = vmatprep.subr.mxu0 0.0
        %749 = vmatpush1.xpose.msra.mxu0 0.0
        %750 = vmatprep.subr.mxu0 0.0
        %751 = vmatpush1.xpose.msra.mxu0 0.0
        %752 = vmatprep.mubr.f32.mxu0 0.0
        %753 = vmatmul.mubr.f32.gmra.mrb[0].mxu0 %v686
        %v754 = vpop.f32.mrb[0].mxu0
        %v755 = vadd.f32 0.0, %v754
        %v756 = vpop.f32.mrb[0].mxu0
        %757 = vdwg.mxu0
        %v759 = vsel %vm246, %v245, 0
        %761 = vmatprep.subr.mxu0 0.0
        %762 = vmatpush1.xpose.msra.mxu0 %v759
        %763 = vmatprep.subr.mxu0 0.0
        %764 = vmatpush1.xpose.msra.mxu0 0.0
        %765 = vmatprep.subr.mxu0 0.0
        %766 = vmatpush1.xpose.msra.mxu0 0.0
        %767 = vmatprep.subr.mxu0 0.0
        %768 = vmatpush1.xpose.msra.mxu0 0.0
        %769 = vmatprep.subr.mxu0 0.0
        %770 = vmatpush1.xpose.msra.mxu0 0.0
        %771 = vmatprep.subr.mxu0 0.0
        %772 = vmatpush1.xpose.msra.mxu0 0.0
        %773 = vmatprep.subr.mxu0 0.0
        %774 = vmatpush1.xpose.msra.mxu0 0.0
        %775 = vmatprep.subr.mxu0 0.0
        %776 = vmatpush1.xpose.msra.mxu0 0.0
        %777 = vmatprep.subr.mxu0 0.0
        %778 = vmatpush1.xpose.msra.mxu0 0.0
        %779 = vmatprep.subr.mxu0 0.0
        %780 = vmatpush1.xpose.msra.mxu0 0.0
        %781 = vmatprep.subr.mxu0 0.0
        %782 = vmatpush1.xpose.msra.mxu0 0.0
        %783 = vmatprep.subr.mxu0 0.0
        %784 = vmatpush1.xpose.msra.mxu0 0.0
        %785 = vmatprep.subr.mxu0 0.0
        %786 = vmatpush1.xpose.msra.mxu0 0.0
        %787 = vmatprep.subr.mxu0 0.0
        %788 = vmatpush1.xpose.msra.mxu0 0.0
        %789 = vmatprep.subr.mxu0 0.0
        %790 = vmatpush1.xpose.msra.mxu0 0.0
        %791 = vmatprep.subr.mxu0 0.0
        %792 = vmatpush1.xpose.msra.mxu0 0.0
        %793 = vmatprep.subr.mxu0 0.0
        %794 = vmatpush1.xpose.msra.mxu0 0.0
        %795 = vmatprep.subr.mxu0 0.0
        %796 = vmatpush1.xpose.msra.mxu0 0.0
        %797 = vmatprep.subr.mxu0 0.0
        %798 = vmatpush1.xpose.msra.mxu0 0.0
        %799 = vmatprep.subr.mxu0 0.0
        %800 = vmatpush1.xpose.msra.mxu0 0.0
        %801 = vmatprep.subr.mxu0 0.0
        %802 = vmatpush1.xpose.msra.mxu0 0.0
        %803 = vmatprep.subr.mxu0 0.0
        %804 = vmatpush1.xpose.msra.mxu0 0.0
        %805 = vmatprep.subr.mxu0 0.0
        %806 = vmatpush1.xpose.msra.mxu0 0.0
        %807 = vmatprep.subr.mxu0 0.0
        %808 = vmatpush1.xpose.msra.mxu0 0.0
        %809 = vmatprep.subr.mxu0 0.0
        %810 = vmatpush1.xpose.msra.mxu0 0.0
        %811 = vmatprep.subr.mxu0 0.0
        %812 = vmatpush1.xpose.msra.mxu0 0.0
        %813 = vmatprep.subr.mxu0 0.0
        %814 = vmatpush1.xpose.msra.mxu0 0.0
        %815 = vmatprep.subr.mxu0 0.0
        %816 = vmatpush1.xpose.msra.mxu0 0.0
        %817 = vmatprep.subr.mxu0 0.0
        %818 = vmatpush1.xpose.msra.mxu0 0.0
        %819 = vmatprep.subr.mxu0 0.0
        %820 = vmatpush1.xpose.msra.mxu0 0.0
        %821 = vmatprep.subr.mxu0 0.0
        %822 = vmatpush1.xpose.msra.mxu0 0.0
        %823 = vmatprep.subr.mxu0 0.0
        %824 = vmatpush1.xpose.msra.mxu0 0.0
        %825 = vmatprep.mubr.f32.mxu0 0.0
        %826 = vmatmul.mubr.f32.gmra.mrb[0].mxu0 %v759
        %v827 = vpop.f32.mrb[0].mxu0
        %v828 = vadd.f32 0.0, %v827
        %v829 = vpop.f32.mrb[0].mxu0
        %830 = vdwg.mxu0
        %v831 = vld [vmem:[%s237] sm:$0x3]
        %v832 = vunpack.c.0.s8 %v831
        %v833 = vcvt.s32.f32 %v832
        %vm834 = vcmp.eq.f32.partialorder %v833, 0.0
        %v835 = vsel %vm834, 1, 0
        %vm836 = vcmp.eq.s32.totalorder %v835, 1
        %v837 = vsel %vm836, -1e+20, %v317
        %v838 = vsel %vm836, -1e+20, %v390
        %v839 = vsel %vm836, -1e+20, %v463
        %v840 = vsel %vm836, -1e+20, %v536
        %v841 = vsel %vm836, -1e+20, %v609
        %v842 = vsel %vm836, -1e+20, %v682
        %v843 = vsel %vm836, -1e+20, %v755
        %v844 = vsel %vm836, -1e+20, %v828
        %v845 = vmul.f32 %v837, 0.17677669
        %v846 = vmul.f32 %v838, 0.17677669
        %v847 = vmul.f32 %v839, 0.17677669
        %v848 = vmul.f32 %v840, 0.17677669
        %v849 = vmul.f32 %v841, 0.17677669
        %v850 = vmul.f32 %v842, 0.17677669
        %v851 = vmul.f32 %v843, 0.17677669
        %v852 = vmul.f32 %v844, 0.17677669
        %vm853 = vcmask 64512
        %v854 = vsel %vm853, %v845, -inf
        %855 = vmax.xlane.f32.xlu0 %v854
        %v856 = vpop.xlane.xlu0 %855
        %v857 = vsel %vm853, %v846, -inf
        %858 = vmax.xlane.f32.xlu0 %v857
        %v859 = vpop.xlane.xlu0 %858
        %v860 = vsel %vm853, %v847, -inf
        %861 = vmax.xlane.f32.xlu0 %v860
        %v862 = vpop.xlane.xlu0 %861
        %v863 = vsel %vm853, %v848, -inf
        %864 = vmax.xlane.f32.xlu0 %v863
        %v865 = vpop.xlane.xlu0 %864
        %v866 = vsel %vm853, %v849, -inf
        %867 = vmax.xlane.f32.xlu0 %v866
        %v868 = vpop.xlane.xlu0 %867
        %v869 = vsel %vm853, %v850, -inf
        %870 = vmax.xlane.f32.xlu0 %v869
        %v871 = vpop.xlane.xlu0 %870
        %v872 = vsel %vm853, %v851, -inf
        %873 = vmax.xlane.f32.xlu0 %v872
        %v874 = vpop.xlane.xlu0 %873
        %v875 = vsel %vm853, %v852, -inf
        %876 = vmax.xlane.f32.xlu0 %v875
        %v877 = vpop.xlane.xlu0 %876
        %v878 = vsub.f32 %v845, %v856
        %v879 = vsub.f32 %v846, %v859
        %v880 = vsub.f32 %v847, %v862
        %v881 = vsub.f32 %v848, %v865
        %v882 = vsub.f32 %v849, %v868
        %v883 = vsub.f32 %v850, %v871
        %v884 = vsub.f32 %v851, %v874
        %v885 = vsub.f32 %v852, %v877
        %v886 = vmul.f32 %v878, 1.442695
        %v887 = vpow.pop %v886
        %v888 = vmul.f32 %v879, 1.442695
        %v889 = vpow.pop %v888
        %v890 = vmul.f32 %v880, 1.442695
        %v891 = vpow.pop %v890
        %v892 = vmul.f32 %v881, 1.442695
        %v893 = vpow.pop %v892
        %v894 = vmul.f32 %v882, 1.442695
        %v895 = vpow.pop %v894
        %v896 = vmul.f32 %v883, 1.442695
        %v897 = vpow.pop %v896
        %v898 = vmul.f32 %v884, 1.442695
        %v899 = vpow.pop %v898
        %v900 = vmul.f32 %v885, 1.442695
        %v901 = vpow.pop %v900
        %v902 = vsel %vm853, %v887, 0.0
        %903 = vadd.xlane.f32.xlu0 %v902
        %v904 = vpop.xlane.xlu0 %903
        %v905 = vsel %vm853, %v889, 0.0
        %906 = vadd.xlane.f32.xlu0 %v905
        %v907 = vpop.xlane.xlu0 %906
        %v908 = vsel %vm853, %v891, 0.0
        %909 = vadd.xlane.f32.xlu0 %v908
        %v910 = vpop.xlane.xlu0 %909
        %v911 = vsel %vm853, %v893, 0.0
        %912 = vadd.xlane.f32.xlu0 %v911
        %v913 = vpop.xlane.xlu0 %912
        %v914 = vsel %vm853, %v895, 0.0
        %915 = vadd.xlane.f32.xlu0 %v914
        %v916 = vpop.xlane.xlu0 %915
        %v917 = vsel %vm853, %v897, 0.0
        %918 = vadd.xlane.f32.xlu0 %v917
        %v919 = vpop.xlane.xlu0 %918
        %v920 = vsel %vm853, %v899, 0.0
        %921 = vadd.xlane.f32.xlu0 %v920
        %v922 = vpop.xlane.xlu0 %921
        %v923 = vsel %vm853, %v901, 0.0
        %924 = vadd.xlane.f32.xlu0 %v923
        %v925 = vpop.xlane.xlu0 %924
        %v926 = vrcp.pop %v904
        %v927 = vrcp.pop %v907
        %v928 = vrcp.pop %v910
        %v929 = vrcp.pop %v913
        %v930 = vrcp.pop %v916
        %v931 = vrcp.pop %v919
        %v932 = vrcp.pop %v922
        %v933 = vrcp.pop %v925
        %v934 = vmul.f32 %v887, %v926
        %v935 = vmul.f32 %v889, %v927
        %v936 = vmul.f32 %v891, %v928
        %v937 = vmul.f32 %v893, %v929
        %v938 = vmul.f32 %v895, %v930
        %v939 = vmul.f32 %v897, %v931
        %v940 = vmul.f32 %v899, %v932
        %v941 = vmul.f32 %v901, %v933
        %v943 = vsel %vm853, %v934, 0
        %945 = vmatprep.subr.mxu0 0.0
        %946 = vmatpush1.msra.mxu0 %v238
        %947 = vmatprep.subr.mxu0 0.0
        %948 = vmatpush1.msra.mxu0 0.0
        %949 = vmatprep.subr.mxu0 0.0
        %950 = vmatpush1.msra.mxu0 0.0
        %951 = vmatprep.subr.mxu0 0.0
        %952 = vmatpush1.msra.mxu0 0.0
        %953 = vmatprep.subr.mxu0 0.0
        %954 = vmatpush1.msra.mxu0 0.0
        %955 = vmatprep.subr.mxu0 0.0
        %956 = vmatpush1.msra.mxu0 0.0
        %957 = vmatprep.subr.mxu0 0.0
        %958 = vmatpush1.msra.mxu0 0.0
        %959 = vmatprep.subr.mxu0 0.0
        %960 = vmatpush1.msra.mxu0 0.0
        %961 = vmatprep.subr.mxu0 0.0
        %962 = vmatpush1.msra.mxu0 0.0
        %963 = vmatprep.subr.mxu0 0.0
        %964 = vmatpush1.msra.mxu0 0.0
        %965 = vmatprep.subr.mxu0 0.0
        %966 = vmatpush1.msra.mxu0 0.0
        %967 = vmatprep.subr.mxu0 0.0
        %968 = vmatpush1.msra.mxu0 0.0
        %969 = vmatprep.subr.mxu0 0.0
        %970 = vmatpush1.msra.mxu0 0.0
        %971 = vmatprep.subr.mxu0 0.0
        %972 = vmatpush1.msra.mxu0 0.0
        %973 = vmatprep.subr.mxu0 0.0
        %974 = vmatpush1.msra.mxu0 0.0
        %975 = vmatprep.subr.mxu0 0.0
        %976 = vmatpush1.msra.mxu0 0.0
        %977 = vmatprep.subr.mxu0 0.0
        %978 = vmatpush1.msra.mxu0 0.0
        %979 = vmatprep.subr.mxu0 0.0
        %980 = vmatpush1.msra.mxu0 0.0
        %981 = vmatprep.subr.mxu0 0.0
        %982 = vmatpush1.msra.mxu0 0.0
        %983 = vmatprep.subr.mxu0 0.0
        %984 = vmatpush1.msra.mxu0 0.0
        %985 = vmatprep.subr.mxu0 0.0
        %986 = vmatpush1.msra.mxu0 0.0
        %987 = vmatprep.subr.mxu0 0.0
        %988 = vmatpush1.msra.mxu0 0.0
        %989 = vmatprep.subr.mxu0 0.0
        %990 = vmatpush1.msra.mxu0 0.0
        %991 = vmatprep.subr.mxu0 0.0
        %992 = vmatpush1.msra.mxu0 0.0
        %993 = vmatprep.subr.mxu0 0.0
        %994 = vmatpush1.msra.mxu0 0.0
        %995 = vmatprep.subr.mxu0 0.0
        %996 = vmatpush1.msra.mxu0 0.0
        %997 = vmatprep.subr.mxu0 0.0
        %998 = vmatpush1.msra.mxu0 0.0
        %999 = vmatprep.subr.mxu0 0.0
        %1000 = vmatpush1.msra.mxu0 0.0
        %1001 = vmatprep.subr.mxu0 0.0
        %1002 = vmatpush1.msra.mxu0 0.0
        %1003 = vmatprep.subr.mxu0 0.0
        %1004 = vmatpush1.msra.mxu0 0.0
        %1005 = vmatprep.subr.mxu0 0.0
        %1006 = vmatpush1.msra.mxu0 0.0
        %1007 = vmatprep.subr.mxu0 0.0
        %1008 = vmatpush1.msra.mxu0 0.0
        %1009 = vmatprep.mubr.f32.mxu0 0.0
        %1010 = vmatmul.mubr.f32.gmra.mrb[0].mxu0 %v943
        %v1011 = vpop.f32.mrb[0].mxu0
        %v1012 = vadd.f32 0.0, %v1011
        %v1013 = vpop.f32.mrb[0].mxu0
        %1014 = vdwg.mxu0
        %v1016 = vsel %vm853, %v935, 0
        %1018 = vmatprep.subr.mxu0 0.0
        %1019 = vmatpush1.msra.mxu0 %v239
        %1020 = vmatprep.subr.mxu0 0.0
        %1021 = vmatpush1.msra.mxu0 0.0
        %1022 = vmatprep.subr.mxu0 0.0
        %1023 = vmatpush1.msra.mxu0 0.0
        %1024 = vmatprep.subr.mxu0 0.0
        %1025 = vmatpush1.msra.mxu0 0.0
        %1026 = vmatprep.subr.mxu0 0.0
        %1027 = vmatpush1.msra.mxu0 0.0
        %1028 = vmatprep.subr.mxu0 0.0
        %1029 = vmatpush1.msra.mxu0 0.0
        %1030 = vmatprep.subr.mxu0 0.0
        %1031 = vmatpush1.msra.mxu0 0.0
        %1032 = vmatprep.subr.mxu0 0.0
        %1033 = vmatpush1.msra.mxu0 0.0
        %1034 = vmatprep.subr.mxu0 0.0
        %1035 = vmatpush1.msra.mxu0 0.0
        %1036 = vmatprep.subr.mxu0 0.0
        %1037 = vmatpush1.msra.mxu0 0.0
        %1038 = vmatprep.subr.mxu0 0.0
        %1039 = vmatpush1.msra.mxu0 0.0
        %1040 = vmatprep.subr.mxu0 0.0
        %1041 = vmatpush1.msra.mxu0 0.0
        %1042 = vmatprep.subr.mxu0 0.0
        %1043 = vmatpush1.msra.mxu0 0.0
        %1044 = vmatprep.subr.mxu0 0.0
        %1045 = vmatpush1.msra.mxu0 0.0
        %1046 = vmatprep.subr.mxu0 0.0
        %1047 = vmatpush1.msra.mxu0 0.0
        %1048 = vmatprep.subr.mxu0 0.0
        %1049 = vmatpush1.msra.mxu0 0.0
        %1050 = vmatprep.subr.mxu0 0.0
        %1051 = vmatpush1.msra.mxu0 0.0
        %1052 = vmatprep.subr.mxu0 0.0
        %1053 = vmatpush1.msra.mxu0 0.0
        %1054 = vmatprep.subr.mxu0 0.0
        %1055 = vmatpush1.msra.mxu0 0.0
        %1056 = vmatprep.subr.mxu0 0.0
        %1057 = vmatpush1.msra.mxu0 0.0
        %1058 = vmatprep.subr.mxu0 0.0
        %1059 = vmatpush1.msra.mxu0 0.0
        %1060 = vmatprep.subr.mxu0 0.0
        %1061 = vmatpush1.msra.mxu0 0.0
        %1062 = vmatprep.subr.mxu0 0.0
        %1063 = vmatpush1.msra.mxu0 0.0
        %1064 = vmatprep.subr.mxu0 0.0
        %1065 = vmatpush1.msra.mxu0 0.0
        %1066 = vmatprep.subr.mxu0 0.0
        %1067 = vmatpush1.msra.mxu0 0.0
        %1068 = vmatprep.subr.mxu0 0.0
        %1069 = vmatpush1.msra.mxu0 0.0
        %1070 = vmatprep.subr.mxu0 0.0
        %1071 = vmatpush1.msra.mxu0 0.0
        %1072 = vmatprep.subr.mxu0 0.0
        %1073 = vmatpush1.msra.mxu0 0.0
        %1074 = vmatprep.subr.mxu0 0.0
        %1075 = vmatpush1.msra.mxu0 0.0
        %1076 = vmatprep.subr.mxu0 0.0
        %1077 = vmatpush1.msra.mxu0 0.0
        %1078 = vmatprep.subr.mxu0 0.0
        %1079 = vmatpush1.msra.mxu0 0.0
        %1080 = vmatprep.subr.mxu0 0.0
        %1081 = vmatpush1.msra.mxu0 0.0
        %1082 = vmatprep.mubr.f32.mxu0 0.0
        %1083 = vmatmul.mubr.f32.gmra.mrb[0].mxu0 %v1016
        %v1084 = vpop.f32.mrb[0].mxu0
        %v1085 = vadd.f32 0.0, %v1084
        %v1086 = vpop.f32.mrb[0].mxu0
        %1087 = vdwg.mxu0
        %v1089 = vsel %vm853, %v936, 0
        %1091 = vmatprep.subr.mxu0 0.0
        %1092 = vmatpush1.msra.mxu0 %v240
        %1093 = vmatprep.subr.mxu0 0.0
        %1094 = vmatpush1.msra.mxu0 0.0
        %1095 = vmatprep.subr.mxu0 0.0
        %1096 = vmatpush1.msra.mxu0 0.0
        %1097 = vmatprep.subr.mxu0 0.0
        %1098 = vmatpush1.msra.mxu0 0.0
        %1099 = vmatprep.subr.mxu0 0.0
        %1100 = vmatpush1.msra.mxu0 0.0
        %1101 = vmatprep.subr.mxu0 0.0
        %1102 = vmatpush1.msra.mxu0 0.0
        %1103 = vmatprep.subr.mxu0 0.0
        %1104 = vmatpush1.msra.mxu0 0.0
        %1105 = vmatprep.subr.mxu0 0.0
        %1106 = vmatpush1.msra.mxu0 0.0
        %1107 = vmatprep.subr.mxu0 0.0
        %1108 = vmatpush1.msra.mxu0 0.0
        %1109 = vmatprep.subr.mxu0 0.0
        %1110 = vmatpush1.msra.mxu0 0.0
        %1111 = vmatprep.subr.mxu0 0.0
        %1112 = vmatpush1.msra.mxu0 0.0
        %1113 = vmatprep.subr.mxu0 0.0
        %1114 = vmatpush1.msra.mxu0 0.0
        %1115 = vmatprep.subr.mxu0 0.0
        %1116 = vmatpush1.msra.mxu0 0.0
        %1117 = vmatprep.subr.mxu0 0.0
        %1118 = vmatpush1.msra.mxu0 0.0
        %1119 = vmatprep.subr.mxu0 0.0
        %1120 = vmatpush1.msra.mxu0 0.0
        %1121 = vmatprep.subr.mxu0 0.0
        %1122 = vmatpush1.msra.mxu0 0.0
        %1123 = vmatprep.subr.mxu0 0.0
        %1124 = vmatpush1.msra.mxu0 0.0
        %1125 = vmatprep.subr.mxu0 0.0
        %1126 = vmatpush1.msra.mxu0 0.0
        %1127 = vmatprep.subr.mxu0 0.0
        %1128 = vmatpush1.msra.mxu0 0.0
        %1129 = vmatprep.subr.mxu0 0.0
        %1130 = vmatpush1.msra.mxu0 0.0
        %1131 = vmatprep.subr.mxu0 0.0
        %1132 = vmatpush1.msra.mxu0 0.0
        %1133 = vmatprep.subr.mxu0 0.0
        %1134 = vmatpush1.msra.mxu0 0.0
        %1135 = vmatprep.subr.mxu0 0.0
        %1136 = vmatpush1.msra.mxu0 0.0
        %1137 = vmatprep.subr.mxu0 0.0
        %1138 = vmatpush1.msra.mxu0 0.0
        %1139 = vmatprep.subr.mxu0 0.0
        %1140 = vmatpush1.msra.mxu0 0.0
        %1141 = vmatprep.subr.mxu0 0.0
        %1142 = vmatpush1.msra.mxu0 0.0
        %1143 = vmatprep.subr.mxu0 0.0
        %1144 = vmatpush1.msra.mxu0 0.0
        %1145 = vmatprep.subr.mxu0 0.0
        %1146 = vmatpush1.msra.mxu0 0.0
        %1147 = vmatprep.subr.mxu0 0.0
        %1148 = vmatpush1.msra.mxu0 0.0
        %1149 = vmatprep.subr.mxu0 0.0
        %1150 = vmatpush1.msra.mxu0 0.0
        %1151 = vmatprep.subr.mxu0 0.0
        %1152 = vmatpush1.msra.mxu0 0.0
        %1153 = vmatprep.subr.mxu0 0.0
        %1154 = vmatpush1.msra.mxu0 0.0
        %1155 = vmatprep.mubr.f32.mxu0 0.0
        %1156 = vmatmul.mubr.f32.gmra.mrb[0].mxu0 %v1089
        %v1157 = vpop.f32.mrb[0].mxu0
        %v1158 = vadd.f32 0.0, %v1157
        %v1159 = vpop.f32.mrb[0].mxu0
        %1160 = vdwg.mxu0
        %v1162 = vsel %vm853, %v937, 0
        %1164 = vmatprep.subr.mxu0 0.0
        %1165 = vmatpush1.msra.mxu0 %v241
        %1166 = vmatprep.subr.mxu0 0.0
        %1167 = vmatpush1.msra.mxu0 0.0
        %1168 = vmatprep.subr.mxu0 0.0
        %1169 = vmatpush1.msra.mxu0 0.0
        %1170 = vmatprep.subr.mxu0 0.0
        %1171 = vmatpush1.msra.mxu0 0.0
        %1172 = vmatprep.subr.mxu0 0.0
        %1173 = vmatpush1.msra.mxu0 0.0
        %1174 = vmatprep.subr.mxu0 0.0
        %1175 = vmatpush1.msra.mxu0 0.0
        %1176 = vmatprep.subr.mxu0 0.0
        %1177 = vmatpush1.msra.mxu0 0.0
        %1178 = vmatprep.subr.mxu0 0.0
        %1179 = vmatpush1.msra.mxu0 0.0
        %1180 = vmatprep.subr.mxu0 0.0
        %1181 = vmatpush1.msra.mxu0 0.0
        %1182 = vmatprep.subr.mxu0 0.0
        %1183 = vmatpush1.msra.mxu0 0.0
        %1184 = vmatprep.subr.mxu0 0.0
        %1185 = vmatpush1.msra.mxu0 0.0
        %1186 = vmatprep.subr.mxu0 0.0
        %1187 = vmatpush1.msra.mxu0 0.0
        %1188 = vmatprep.subr.mxu0 0.0
        %1189 = vmatpush1.msra.mxu0 0.0
        %1190 = vmatprep.subr.mxu0 0.0
        %1191 = vmatpush1.msra.mxu0 0.0
        %1192 = vmatprep.subr.mxu0 0.0
        %1193 = vmatpush1.msra.mxu0 0.0
        %1194 = vmatprep.subr.mxu0 0.0
        %1195 = vmatpush1.msra.mxu0 0.0
        %1196 = vmatprep.subr.mxu0 0.0
        %1197 = vmatpush1.msra.mxu0 0.0
        %1198 = vmatprep.subr.mxu0 0.0
        %1199 = vmatpush1.msra.mxu0 0.0
        %1200 = vmatprep.subr.mxu0 0.0
        %1201 = vmatpush1.msra.mxu0 0.0
        %1202 = vmatprep.subr.mxu0 0.0
        %1203 = vmatpush1.msra.mxu0 0.0
        %1204 = vmatprep.subr.mxu0 0.0
        %1205 = vmatpush1.msra.mxu0 0.0
        %1206 = vmatprep.subr.mxu0 0.0
        %1207 = vmatpush1.msra.mxu0 0.0
        %1208 = vmatprep.subr.mxu0 0.0
        %1209 = vmatpush1.msra.mxu0 0.0
        %1210 = vmatprep.subr.mxu0 0.0
        %1211 = vmatpush1.msra.mxu0 0.0
        %1212 = vmatprep.subr.mxu0 0.0
        %1213 = vmatpush1.msra.mxu0 0.0
        %1214 = vmatprep.subr.mxu0 0.0
        %1215 = vmatpush1.msra.mxu0 0.0
        %1216 = vmatprep.subr.mxu0 0.0
        %1217 = vmatpush1.msra.mxu0 0.0
        %1218 = vmatprep.subr.mxu0 0.0
        %1219 = vmatpush1.msra.mxu0 0.0
        %1220 = vmatprep.subr.mxu0 0.0
        %1221 = vmatpush1.msra.mxu0 0.0
        %1222 = vmatprep.subr.mxu0 0.0
        %1223 = vmatpush1.msra.mxu0 0.0
        %1224 = vmatprep.subr.mxu0 0.0
        %1225 = vmatpush1.msra.mxu0 0.0
        %1226 = vmatprep.subr.mxu0 0.0
        %1227 = vmatpush1.msra.mxu0 0.0
        %1228 = vmatprep.mubr.f32.mxu0 0.0
        %1229 = vmatmul.mubr.f32.gmra.mrb[0].mxu0 %v1162
        %v1230 = vpop.f32.mrb[0].mxu0
        %v1231 = vadd.f32 0.0, %v1230
        %v1232 = vpop.f32.mrb[0].mxu0
        %1233 = vdwg.mxu0
        %v1235 = vsel %vm853, %v938, 0
        %1237 = vmatprep.subr.mxu0 0.0
        %1238 = vmatpush1.msra.mxu0 %v242
        %1239 = vmatprep.subr.mxu0 0.0
        %1240 = vmatpush1.msra.mxu0 0.0
        %1241 = vmatprep.subr.mxu0 0.0
        %1242 = vmatpush1.msra.mxu0 0.0
        %1243 = vmatprep.subr.mxu0 0.0
        %1244 = vmatpush1.msra.mxu0 0.0
        %1245 = vmatprep.subr.mxu0 0.0
        %1246 = vmatpush1.msra.mxu0 0.0
        %1247 = vmatprep.subr.mxu0 0.0
        %1248 = vmatpush1.msra.mxu0 0.0
        %1249 = vmatprep.subr.mxu0 0.0
        %1250 = vmatpush1.msra.mxu0 0.0
        %1251 = vmatprep.subr.mxu0 0.0
        %1252 = vmatpush1.msra.mxu0 0.0
        %1253 = vmatprep.subr.mxu0 0.0
        %1254 = vmatpush1.msra.mxu0 0.0
        %1255 = vmatprep.subr.mxu0 0.0
        %1256 = vmatpush1.msra.mxu0 0.0
        %1257 = vmatprep.subr.mxu0 0.0
        %1258 = vmatpush1.msra.mxu0 0.0
        %1259 = vmatprep.subr.mxu0 0.0
        %1260 = vmatpush1.msra.mxu0 0.0
        %1261 = vmatprep.subr.mxu0 0.0
        %1262 = vmatpush1.msra.mxu0 0.0
        %1263 = vmatprep.subr.mxu0 0.0
        %1264 = vmatpush1.msra.mxu0 0.0
        %1265 = vmatprep.subr.mxu0 0.0
        %1266 = vmatpush1.msra.mxu0 0.0
        %1267 = vmatprep.subr.mxu0 0.0
        %1268 = vmatpush1.msra.mxu0 0.0
        %1269 = vmatprep.subr.mxu0 0.0
        %1270 = vmatpush1.msra.mxu0 0.0
        %1271 = vmatprep.subr.mxu0 0.0
        %1272 = vmatpush1.msra.mxu0 0.0
        %1273 = vmatprep.subr.mxu0 0.0
        %1274 = vmatpush1.msra.mxu0 0.0
        %1275 = vmatprep.subr.mxu0 0.0
        %1276 = vmatpush1.msra.mxu0 0.0
        %1277 = vmatprep.subr.mxu0 0.0
        %1278 = vmatpush1.msra.mxu0 0.0
        %1279 = vmatprep.subr.mxu0 0.0
        %1280 = vmatpush1.msra.mxu0 0.0
        %1281 = vmatprep.subr.mxu0 0.0
        %1282 = vmatpush1.msra.mxu0 0.0
        %1283 = vmatprep.subr.mxu0 0.0
        %1284 = vmatpush1.msra.mxu0 0.0
        %1285 = vmatprep.subr.mxu0 0.0
        %1286 = vmatpush1.msra.mxu0 0.0
        %1287 = vmatprep.subr.mxu0 0.0
        %1288 = vmatpush1.msra.mxu0 0.0
        %1289 = vmatprep.subr.mxu0 0.0
        %1290 = vmatpush1.msra.mxu0 0.0
        %1291 = vmatprep.subr.mxu0 0.0
        %1292 = vmatpush1.msra.mxu0 0.0
        %1293 = vmatprep.subr.mxu0 0.0
        %1294 = vmatpush1.msra.mxu0 0.0
        %1295 = vmatprep.subr.mxu0 0.0
        %1296 = vmatpush1.msra.mxu0 0.0
        %1297 = vmatprep.subr.mxu0 0.0
        %1298 = vmatpush1.msra.mxu0 0.0
        %1299 = vmatprep.subr.mxu0 0.0
        %1300 = vmatpush1.msra.mxu0 0.0
        %1301 = vmatprep.mubr.f32.mxu0 0.0
        %1302 = vmatmul.mubr.f32.gmra.mrb[0].mxu0 %v1235
        %v1303 = vpop.f32.mrb[0].mxu0
        %v1304 = vadd.f32 0.0, %v1303
        %v1305 = vpop.f32.mrb[0].mxu0
        %1306 = vdwg.mxu0
        %v1308 = vsel %vm853, %v939, 0
        %1310 = vmatprep.subr.mxu0 0.0
        %1311 = vmatpush1.msra.mxu0 %v243
        %1312 = vmatprep.subr.mxu0 0.0
        %1313 = vmatpush1.msra.mxu0 0.0
        %1314 = vmatprep.subr.mxu0 0.0
        %1315 = vmatpush1.msra.mxu0 0.0
        %1316 = vmatprep.subr.mxu0 0.0
        %1317 = vmatpush1.msra.mxu0 0.0
        %1318 = vmatprep.subr.mxu0 0.0
        %1319 = vmatpush1.msra.mxu0 0.0
        %1320 = vmatprep.subr.mxu0 0.0
        %1321 = vmatpush1.msra.mxu0 0.0
        %1322 = vmatprep.subr.mxu0 0.0
        %1323 = vmatpush1.msra.mxu0 0.0
        %1324 = vmatprep.subr.mxu0 0.0
        %1325 = vmatpush1.msra.mxu0 0.0
        %1326 = vmatprep.subr.mxu0 0.0
        %1327 = vmatpush1.msra.mxu0 0.0
        %1328 = vmatprep.subr.mxu0 0.0
        %1329 = vmatpush1.msra.mxu0 0.0
        %1330 = vmatprep.subr.mxu0 0.0
        %1331 = vmatpush1.msra.mxu0 0.0
        %1332 = vmatprep.subr.mxu0 0.0
        %1333 = vmatpush1.msra.mxu0 0.0
        %1334 = vmatprep.subr.mxu0 0.0
        %1335 = vmatpush1.msra.mxu0 0.0
        %1336 = vmatprep.subr.mxu0 0.0
        %1337 = vmatpush1.msra.mxu0 0.0
        %1338 = vmatprep.subr.mxu0 0.0
        %1339 = vmatpush1.msra.mxu0 0.0
        %1340 = vmatprep.subr.mxu0 0.0
        %1341 = vmatpush1.msra.mxu0 0.0
        %1342 = vmatprep.subr.mxu0 0.0
        %1343 = vmatpush1.msra.mxu0 0.0
        %1344 = vmatprep.subr.mxu0 0.0
        %1345 = vmatpush1.msra.mxu0 0.0
        %1346 = vmatprep.subr.mxu0 0.0
        %1347 = vmatpush1.msra.mxu0 0.0
        %1348 = vmatprep.subr.mxu0 0.0
        %1349 = vmatpush1.msra.mxu0 0.0
        %1350 = vmatprep.subr.mxu0 0.0
        %1351 = vmatpush1.msra.mxu0 0.0
        %1352 = vmatprep.subr.mxu0 0.0
        %1353 = vmatpush1.msra.mxu0 0.0
        %1354 = vmatprep.subr.mxu0 0.0
        %1355 = vmatpush1.msra.mxu0 0.0
        %1356 = vmatprep.subr.mxu0 0.0
        %1357 = vmatpush1.msra.mxu0 0.0
        %1358 = vmatprep.subr.mxu0 0.0
        %1359 = vmatpush1.msra.mxu0 0.0
        %1360 = vmatprep.subr.mxu0 0.0
        %1361 = vmatpush1.msra.mxu0 0.0
        %1362 = vmatprep.subr.mxu0 0.0
        %1363 = vmatpush1.msra.mxu0 0.0
        %1364 = vmatprep.subr.mxu0 0.0
        %1365 = vmatpush1.msra.mxu0 0.0
        %1366 = vmatprep.subr.mxu0 0.0
        %1367 = vmatpush1.msra.mxu0 0.0
        %1368 = vmatprep.subr.mxu0 0.0
        %1369 = vmatpush1.msra.mxu0 0.0
        %1370 = vmatprep.subr.mxu0 0.0
        %1371 = vmatpush1.msra.mxu0 0.0
        %1372 = vmatprep.subr.mxu0 0.0
        %1373 = vmatpush1.msra.mxu0 0.0
        %1374 = vmatprep.mubr.f32.mxu0 0.0
        %1375 = vmatmul.mubr.f32.gmra.mrb[0].mxu0 %v1308
        %v1376 = vpop.f32.mrb[0].mxu0
        %v1377 = vadd.f32 0.0, %v1376
        %v1378 = vpop.f32.mrb[0].mxu0
        %1379 = vdwg.mxu0
        %v1381 = vsel %vm853, %v940, 0
        %1383 = vmatprep.subr.mxu0 0.0
        %1384 = vmatpush1.msra.mxu0 %v244
        %1385 = vmatprep.subr.mxu0 0.0
        %1386 = vmatpush1.msra.mxu0 0.0
        %1387 = vmatprep.subr.mxu0 0.0
        %1388 = vmatpush1.msra.mxu0 0.0
        %1389 = vmatprep.subr.mxu0 0.0
        %1390 = vmatpush1.msra.mxu0 0.0
        %1391 = vmatprep.subr.mxu0 0.0
        %1392 = vmatpush1.msra.mxu0 0.0
        %1393 = vmatprep.subr.mxu0 0.0
        %1394 = vmatpush1.msra.mxu0 0.0
        %1395 = vmatprep.subr.mxu0 0.0
        %1396 = vmatpush1.msra.mxu0 0.0
        %1397 = vmatprep.subr.mxu0 0.0
        %1398 = vmatpush1.msra.mxu0 0.0
        %1399 = vmatprep.subr.mxu0 0.0
        %1400 = vmatpush1.msra.mxu0 0.0
        %1401 = vmatprep.subr.mxu0 0.0
        %1402 = vmatpush1.msra.mxu0 0.0
        %1403 = vmatprep.subr.mxu0 0.0
        %1404 = vmatpush1.msra.mxu0 0.0
        %1405 = vmatprep.subr.mxu0 0.0
        %1406 = vmatpush1.msra.mxu0 0.0
        %1407 = vmatprep.subr.mxu0 0.0
        %1408 = vmatpush1.msra.mxu0 0.0
        %1409 = vmatprep.subr.mxu0 0.0
        %1410 = vmatpush1.msra.mxu0 0.0
        %1411 = vmatprep.subr.mxu0 0.0
        %1412 = vmatpush1.msra.mxu0 0.0
        %1413 = vmatprep.subr.mxu0 0.0
        %1414 = vmatpush1.msra.mxu0 0.0
        %1415 = vmatprep.subr.mxu0 0.0
        %1416 = vmatpush1.msra.mxu0 0.0
        %1417 = vmatprep.subr.mxu0 0.0
        %1418 = vmatpush1.msra.mxu0 0.0
        %1419 = vmatprep.subr.mxu0 0.0
        %1420 = vmatpush1.msra.mxu0 0.0
        %1421 = vmatprep.subr.mxu0 0.0
        %1422 = vmatpush1.msra.mxu0 0.0
        %1423 = vmatprep.subr.mxu0 0.0
        %1424 = vmatpush1.msra.mxu0 0.0
        %1425 = vmatprep.subr.mxu0 0.0
        %1426 = vmatpush1.msra.mxu0 0.0
        %1427 = vmatprep.subr.mxu0 0.0
        %1428 = vmatpush1.msra.mxu0 0.0
        %1429 = vmatprep.subr.mxu0 0.0
        %1430 = vmatpush1.msra.mxu0 0.0
        %1431 = vmatprep.subr.mxu0 0.0
        %1432 = vmatpush1.msra.mxu0 0.0
        %1433 = vmatprep.subr.mxu0 0.0
        %1434 = vmatpush1.msra.mxu0 0.0
        %1435 = vmatprep.subr.mxu0 0.0
        %1436 = vmatpush1.msra.mxu0 0.0
        %1437 = vmatprep.subr.mxu0 0.0
        %1438 = vmatpush1.msra.mxu0 0.0
        %1439 = vmatprep.subr.mxu0 0.0
        %1440 = vmatpush1.msra.mxu0 0.0
        %1441 = vmatprep.subr.mxu0 0.0
        %1442 = vmatpush1.msra.mxu0 0.0
        %1443 = vmatprep.subr.mxu0 0.0
        %1444 = vmatpush1.msra.mxu0 0.0
        %1445 = vmatprep.subr.mxu0 0.0
        %1446 = vmatpush1.msra.mxu0 0.0
        %1447 = vmatprep.mubr.f32.mxu0 0.0
        %1448 = vmatmul.mubr.f32.gmra.mrb[0].mxu0 %v1381
        %v1449 = vpop.f32.mrb[0].mxu0
        %v1450 = vadd.f32 0.0, %v1449
        %v1451 = vpop.f32.mrb[0].mxu0
        %1452 = vdwg.mxu0
        %v1454 = vsel %vm853, %v941, 0
        %1456 = vmatprep.subr.mxu0 0.0
        %1457 = vmatpush1.msra.mxu0 %v245
        %1458 = vmatprep.subr.mxu0 0.0
        %1459 = vmatpush1.msra.mxu0 0.0
        %1460 = vmatprep.subr.mxu0 0.0
        %1461 = vmatpush1.msra.mxu0 0.0
        %1462 = vmatprep.subr.mxu0 0.0
        %1463 = vmatpush1.msra.mxu0 0.0
        %1464 = vmatprep.subr.mxu0 0.0
        %1465 = vmatpush1.msra.mxu0 0.0
        %1466 = vmatprep.subr.mxu0 0.0
        %1467 = vmatpush1.msra.mxu0 0.0
        %1468 = vmatprep.subr.mxu0 0.0
        %1469 = vmatpush1.msra.mxu0 0.0
        %1470 = vmatprep.subr.mxu0 0.0
        %1471 = vmatpush1.msra.mxu0 0.0
        %1472 = vmatprep.subr.mxu0 0.0
        %1473 = vmatpush1.msra.mxu0 0.0
        %1474 = vmatprep.subr.mxu0 0.0
        %1475 = vmatpush1.msra.mxu0 0.0
        %1476 = vmatprep.subr.mxu0 0.0
        %1477 = vmatpush1.msra.mxu0 0.0
        %1478 = vmatprep.subr.mxu0 0.0
        %1479 = vmatpush1.msra.mxu0 0.0
        %1480 = vmatprep.subr.mxu0 0.0
        %1481 = vmatpush1.msra.mxu0 0.0
        %1482 = vmatprep.subr.mxu0 0.0
        %1483 = vmatpush1.msra.mxu0 0.0
        %1484 = vmatprep.subr.mxu0 0.0
        %1485 = vmatpush1.msra.mxu0 0.0
        %1486 = vmatprep.subr.mxu0 0.0
        %1487 = vmatpush1.msra.mxu0 0.0
        %1488 = vmatprep.subr.mxu0 0.0
        %1489 = vmatpush1.msra.mxu0 0.0
        %1490 = vmatprep.subr.mxu0 0.0
        %1491 = vmatpush1.msra.mxu0 0.0
        %1492 = vmatprep.subr.mxu0 0.0
        %1493 = vmatpush1.msra.mxu0 0.0
        %1494 = vmatprep.subr.mxu0 0.0
        %1495 = vmatpush1.msra.mxu0 0.0
        %1496 = vmatprep.subr.mxu0 0.0
        %1497 = vmatpush1.msra.mxu0 0.0
        %1498 = vmatprep.subr.mxu0 0.0
        %1499 = vmatpush1.msra.mxu0 0.0
        %1500 = vmatprep.subr.mxu0 0.0
        %1501 = vmatpush1.msra.mxu0 0.0
        %1502 = vmatprep.subr.mxu0 0.0
        %1503 = vmatpush1.msra.mxu0 0.0
        %1504 = vmatprep.subr.mxu0 0.0
        %1505 = vmatpush1.msra.mxu0 0.0
        %1506 = vmatprep.subr.mxu0 0.0
        %1507 = vmatpush1.msra.mxu0 0.0
        %1508 = vmatprep.subr.mxu0 0.0
        %1509 = vmatpush1.msra.mxu0 0.0
        %1510 = vmatprep.subr.mxu0 0.0
        %1511 = vmatpush1.msra.mxu0 0.0
        %1512 = vmatprep.subr.mxu0 0.0
        %1513 = vmatpush1.msra.mxu0 0.0
        %1514 = vmatprep.subr.mxu0 0.0
        %1515 = vmatpush1.msra.mxu0 0.0
        %1516 = vmatprep.subr.mxu0 0.0
        %1517 = vmatpush1.msra.mxu0 0.0
        %1518 = vmatprep.subr.mxu0 0.0
        %1519 = vmatpush1.msra.mxu0 0.0
        %1520 = vmatprep.mubr.f32.mxu0 0.0
        %1521 = vmatmul.mubr.f32.gmra.mrb[0].mxu0 %v1454
        %v1522 = vpop.f32.mrb[0].mxu0
        %v1523 = vadd.f32 0.0, %v1522
        %v1524 = vpop.f32.mrb[0].mxu0
        %1525 = vdwg.mxu0
        %v1526 = vld [vmem:[%s2] sm:$0xf]
        %v1527 = vld [vmem:[%s2 + $0x4] sm:$0xf]
        %v1528 = vld [vmem:[%s2 + $0x8] sm:$0xf]
        %v1529 = vld [vmem:[%s2 + $0xc] sm:$0xf]
        %v1530 = vld [vmem:[%s2 + $0x10] sm:$0xf]
        %v1531 = vld [vmem:[%s2 + $0x14] sm:$0xf]
        %v1532 = vld [vmem:[%s2 + $0x18] sm:$0xf]
        %v1533 = vld [vmem:[%s2 + $0x1c] sm:$0xf]
        %v1535 = vsel %vm246, %v1012, 0
        %vm1537 = vcmask 1043456
        %v1539 = vsel %vm1537, %v1526, 0
        %1541 = vmatprep.subr.mxu0 0.0
        %1542 = vmatpush1.msra.mxu0 %v1539
        %1543 = vmatprep.subr.mxu0 0.0
        %1544 = vmatpush1.msra.mxu0 0.0
        %1545 = vmatprep.subr.mxu0 0.0
        %1546 = vmatpush1.msra.mxu0 0.0
        %1547 = vmatprep.subr.mxu0 0.0
        %1548 = vmatpush1.msra.mxu0 0.0
        %1549 = vmatprep.subr.mxu0 0.0
        %1550 = vmatpush1.msra.mxu0 0.0
        %1551 = vmatprep.subr.mxu0 0.0
        %1552 = vmatpush1.msra.mxu0 0.0
        %1553 = vmatprep.subr.mxu0 0.0
        %1554 = vmatpush1.msra.mxu0 0.0
        %1555 = vmatprep.subr.mxu0 0.0
        %1556 = vmatpush1.msra.mxu0 0.0
        %1557 = vmatprep.subr.mxu0 0.0
        %1558 = vmatpush1.msra.mxu0 0.0
        %1559 = vmatprep.subr.mxu0 0.0
        %1560 = vmatpush1.msra.mxu0 0.0
        %1561 = vmatprep.subr.mxu0 0.0
        %1562 = vmatpush1.msra.mxu0 0.0
        %1563 = vmatprep.subr.mxu0 0.0
        %1564 = vmatpush1.msra.mxu0 0.0
        %1565 = vmatprep.subr.mxu0 0.0
        %1566 = vmatpush1.msra.mxu0 0.0
        %1567 = vmatprep.subr.mxu0 0.0
        %1568 = vmatpush1.msra.mxu0 0.0
        %1569 = vmatprep.subr.mxu0 0.0
        %1570 = vmatpush1.msra.mxu0 0.0
        %1571 = vmatprep.subr.mxu0 0.0
        %1572 = vmatpush1.msra.mxu0 0.0
        %1573 = vmatprep.subr.mxu0 0.0
        %1574 = vmatpush1.msra.mxu0 0.0
        %1575 = vmatprep.subr.mxu0 0.0
        %1576 = vmatpush1.msra.mxu0 0.0
        %1577 = vmatprep.subr.mxu0 0.0
        %1578 = vmatpush1.msra.mxu0 0.0
        %1579 = vmatprep.subr.mxu0 0.0
        %1580 = vmatpush1.msra.mxu0 0.0
        %1581 = vmatprep.subr.mxu0 0.0
        %1582 = vmatpush1.msra.mxu0 0.0
        %1583 = vmatprep.subr.mxu0 0.0
        %1584 = vmatpush1.msra.mxu0 0.0
        %1585 = vmatprep.subr.mxu0 0.0
        %1586 = vmatpush1.msra.mxu0 0.0
        %1587 = vmatprep.subr.mxu0 0.0
        %1588 = vmatpush1.msra.mxu0 0.0
        %1589 = vmatprep.subr.mxu0 0.0
        %1590 = vmatpush1.msra.mxu0 0.0
        %1591 = vmatprep.subr.mxu0 0.0
        %1592 = vmatpush1.msra.mxu0 0.0
        %1593 = vmatprep.subr.mxu0 0.0
        %1594 = vmatpush1.msra.mxu0 0.0
        %1595 = vmatprep.subr.mxu0 0.0
        %1596 = vmatpush1.msra.mxu0 0.0
        %1597 = vmatprep.subr.mxu0 0.0
        %1598 = vmatpush1.msra.mxu0 0.0
        %1599 = vmatprep.subr.mxu0 0.0
        %1600 = vmatpush1.msra.mxu0 0.0
        %1601 = vmatprep.subr.mxu0 0.0
        %1602 = vmatpush1.msra.mxu0 0.0
        %1603 = vmatprep.subr.mxu0 0.0
        %1604 = vmatpush1.msra.mxu0 0.0
        %1605 = vmatprep.mubr.f32.mxu0 0.0
        %1606 = vmatmul.mubr.f32.gmra.mrb[0].mxu0 %v1535
        %v1607 = vpop.f32.mrb[0].mxu0
        %v1608 = vadd.f32 0.0, %v1607
        %v1609 = vpop.f32.mrb[0].mxu0
        %1610 = vdwg.mxu0
        %v1612 = vsel %vm246, %v1085, 0
        %v1615 = vsel %vm1537, %v1527, 0
        %1617 = vmatprep.subr.mxu0 0.0
        %1618 = vmatpush1.msra.mxu0 %v1615
        %1619 = vmatprep.subr.mxu0 0.0
        %1620 = vmatpush1.msra.mxu0 0.0
        %1621 = vmatprep.subr.mxu0 0.0
        %1622 = vmatpush1.msra.mxu0 0.0
        %1623 = vmatprep.subr.mxu0 0.0
        %1624 = vmatpush1.msra.mxu0 0.0
        %1625 = vmatprep.subr.mxu0 0.0
        %1626 = vmatpush1.msra.mxu0 0.0
        %1627 = vmatprep.subr.mxu0 0.0
        %1628 = vmatpush1.msra.mxu0 0.0
        %1629 = vmatprep.subr.mxu0 0.0
        %1630 = vmatpush1.msra.mxu0 0.0
        %1631 = vmatprep.subr.mxu0 0.0
        %1632 = vmatpush1.msra.mxu0 0.0
        %1633 = vmatprep.subr.mxu0 0.0
        %1634 = vmatpush1.msra.mxu0 0.0
        %1635 = vmatprep.subr.mxu0 0.0
        %1636 = vmatpush1.msra.mxu0 0.0
        %1637 = vmatprep.subr.mxu0 0.0
        %1638 = vmatpush1.msra.mxu0 0.0
        %1639 = vmatprep.subr.mxu0 0.0
        %1640 = vmatpush1.msra.mxu0 0.0
        %1641 = vmatprep.subr.mxu0 0.0
        %1642 = vmatpush1.msra.mxu0 0.0
        %1643 = vmatprep.subr.mxu0 0.0
        %1644 = vmatpush1.msra.mxu0 0.0
        %1645 = vmatprep.subr.mxu0 0.0
        %1646 = vmatpush1.msra.mxu0 0.0
        %1647 = vmatprep.subr.mxu0 0.0
        %1648 = vmatpush1.msra.mxu0 0.0
        %1649 = vmatprep.subr.mxu0 0.0
        %1650 = vmatpush1.msra.mxu0 0.0
        %1651 = vmatprep.subr.mxu0 0.0
        %1652 = vmatpush1.msra.mxu0 0.0
        %1653 = vmatprep.subr.mxu0 0.0
        %1654 = vmatpush1.msra.mxu0 0.0
        %1655 = vmatprep.subr.mxu0 0.0
        %1656 = vmatpush1.msra.mxu0 0.0
        %1657 = vmatprep.subr.mxu0 0.0
        %1658 = vmatpush1.msra.mxu0 0.0
        %1659 = vmatprep.subr.mxu0 0.0
        %1660 = vmatpush1.msra.mxu0 0.0
        %1661 = vmatprep.subr.mxu0 0.0
        %1662 = vmatpush1.msra.mxu0 0.0
        %1663 = vmatprep.subr.mxu0 0.0
        %1664 = vmatpush1.msra.mxu0 0.0
        %1665 = vmatprep.subr.mxu0 0.0
        %1666 = vmatpush1.msra.mxu0 0.0
        %1667 = vmatprep.subr.mxu0 0.0
        %1668 = vmatpush1.msra.mxu0 0.0
        %1669 = vmatprep.subr.mxu0 0.0
        %1670 = vmatpush1.msra.mxu0 0.0
        %1671 = vmatprep.subr.mxu0 0.0
        %1672 = vmatpush1.msra.mxu0 0.0
        %1673 = vmatprep.subr.mxu0 0.0
        %1674 = vmatpush1.msra.mxu0 0.0
        %1675 = vmatprep.subr.mxu0 0.0
        %1676 = vmatpush1.msra.mxu0 0.0
        %1677 = vmatprep.subr.mxu0 0.0
        %1678 = vmatpush1.msra.mxu0 0.0
        %1679 = vmatprep.subr.mxu0 0.0
        %1680 = vmatpush1.msra.mxu0 0.0
        %1681 = vmatprep.mubr.f32.mxu0 0.0
        %1682 = vmatmul.mubr.f32.gmra.mrb[0].mxu0 %v1612
        %v1683 = vpop.f32.mrb[0].mxu0
        %v1684 = vadd.f32 0.0, %v1683
        %v1685 = vpop.f32.mrb[0].mxu0
        %1686 = vdwg.mxu0
        %v1688 = vsel %vm246, %v1158, 0
        %v1691 = vsel %vm1537, %v1528, 0
        %1693 = vmatprep.subr.mxu0 0.0
        %1694 = vmatpush1.msra.mxu0 %v1691
        %1695 = vmatprep.subr.mxu0 0.0
        %1696 = vmatpush1.msra.mxu0 0.0
        %1697 = vmatprep.subr.mxu0 0.0
        %1698 = vmatpush1.msra.mxu0 0.0
        %1699 = vmatprep.subr.mxu0 0.0
        %1700 = vmatpush1.msra.mxu0 0.0
        %1701 = vmatprep.subr.mxu0 0.0
        %1702 = vmatpush1.msra.mxu0 0.0
        %1703 = vmatprep.subr.mxu0 0.0
        %1704 = vmatpush1.msra.mxu0 0.0
        %1705 = vmatprep.subr.mxu0 0.0
        %1706 = vmatpush1.msra.mxu0 0.0
        %1707 = vmatprep.subr.mxu0 0.0
        %1708 = vmatpush1.msra.mxu0 0.0
        %1709 = vmatprep.subr.mxu0 0.0
        %1710 = vmatpush1.msra.mxu0 0.0
        %1711 = vmatprep.subr.mxu0 0.0
        %1712 = vmatpush1.msra.mxu0 0.0
        %1713 = vmatprep.subr.mxu0 0.0
        %1714 = vmatpush1.msra.mxu0 0.0
        %1715 = vmatprep.subr.mxu0 0.0
        %1716 = vmatpush1.msra.mxu0 0.0
        %1717 = vmatprep.subr.mxu0 0.0
        %1718 = vmatpush1.msra.mxu0 0.0
        %1719 = vmatprep.subr.mxu0 0.0
        %1720 = vmatpush1.msra.mxu0 0.0
        %1721 = vmatprep.subr.mxu0 0.0
        %1722 = vmatpush1.msra.mxu0 0.0
        %1723 = vmatprep.subr.mxu0 0.0
        %1724 = vmatpush1.msra.mxu0 0.0
        %1725 = vmatprep.subr.mxu0 0.0
        %1726 = vmatpush1.msra.mxu0 0.0
        %1727 = vmatprep.subr.mxu0 0.0
        %1728 = vmatpush1.msra.mxu0 0.0
        %1729 = vmatprep.subr.mxu0 0.0
        %1730 = vmatpush1.msra.mxu0 0.0
        %1731 = vmatprep.subr.mxu0 0.0
        %1732 = vmatpush1.msra.mxu0 0.0
        %1733 = vmatprep.subr.mxu0 0.0
        %1734 = vmatpush1.msra.mxu0 0.0
        %1735 = vmatprep.subr.mxu0 0.0
        %1736 = vmatpush1.msra.mxu0 0.0
        %1737 = vmatprep.subr.mxu0 0.0
        %1738 = vmatpush1.msra.mxu0 0.0
        %1739 = vmatprep.subr.mxu0 0.0
        %1740 = vmatpush1.msra.mxu0 0.0
        %1741 = vmatprep.subr.mxu0 0.0
        %1742 = vmatpush1.msra.mxu0 0.0
        %1743 = vmatprep.subr.mxu0 0.0
        %1744 = vmatpush1.msra.mxu0 0.0
        %1745 = vmatprep.subr.mxu0 0.0
        %1746 = vmatpush1.msra.mxu0 0.0
        %1747 = vmatprep.subr.mxu0 0.0
        %1748 = vmatpush1.msra.mxu0 0.0
        %1749 = vmatprep.subr.mxu0 0.0
        %1750 = vmatpush1.msra.mxu0 0.0
        %1751 = vmatprep.subr.mxu0 0.0
        %1752 = vmatpush1.msra.mxu0 0.0
        %1753 = vmatprep.subr.mxu0 0.0
        %1754 = vmatpush1.msra.mxu0 0.0
        %1755 = vmatprep.subr.mxu0 0.0
        %1756 = vmatpush1.msra.mxu0 0.0
        %1757 = vmatprep.mubr.f32.mxu0 0.0
        %1758 = vmatmul.mubr.f32.gmra.mrb[0].mxu0 %v1688
        %v1759 = vpop.f32.mrb[0].mxu0
        %v1760 = vadd.f32 0.0, %v1759
        %v1761 = vpop.f32.mrb[0].mxu0
        %1762 = vdwg.mxu0
        %v1764 = vsel %vm246, %v1231, 0
        %v1767 = vsel %vm1537, %v1529, 0
        %1769 = vmatprep.subr.mxu0 0.0
        %1770 = vmatpush1.msra.mxu0 %v1767
        %1771 = vmatprep.subr.mxu0 0.0
        %1772 = vmatpush1.msra.mxu0 0.0
        %1773 = vmatprep.subr.mxu0 0.0
        %1774 = vmatpush1.msra.mxu0 0.0
        %1775 = vmatprep.subr.mxu0 0.0
        %1776 = vmatpush1.msra.mxu0 0.0
        %1777 = vmatprep.subr.mxu0 0.0
        %1778 = vmatpush1.msra.mxu0 0.0
        %1779 = vmatprep.subr.mxu0 0.0
        %1780 = vmatpush1.msra.mxu0 0.0
        %1781 = vmatprep.subr.mxu0 0.0
        %1782 = vmatpush1.msra.mxu0 0.0
        %1783 = vmatprep.subr.mxu0 0.0
        %1784 = vmatpush1.msra.mxu0 0.0
        %1785 = vmatprep.subr.mxu0 0.0
        %1786 = vmatpush1.msra.mxu0 0.0
        %1787 = vmatprep.subr.mxu0 0.0
        %1788 = vmatpush1.msra.mxu0 0.0
        %1789 = vmatprep.subr.mxu0 0.0
        %1790 = vmatpush1.msra.mxu0 0.0
        %1791 = vmatprep.subr.mxu0 0.0
        %1792 = vmatpush1.msra.mxu0 0.0
        %1793 = vmatprep.subr.mxu0 0.0
        %1794 = vmatpush1.msra.mxu0 0.0
        %1795 = vmatprep.subr.mxu0 0.0
        %1796 = vmatpush1.msra.mxu0 0.0
        %1797 = vmatprep.subr.mxu0 0.0
        %1798 = vmatpush1.msra.mxu0 0.0
        %1799 = vmatprep.subr.mxu0 0.0
        %1800 = vmatpush1.msra.mxu0 0.0
        %1801 = vmatprep.subr.mxu0 0.0
        %1802 = vmatpush1.msra.mxu0 0.0
        %1803 = vmatprep.subr.mxu0 0.0
        %1804 = vmatpush1.msra.mxu0 0.0
        %1805 = vmatprep.subr.mxu0 0.0
        %1806 = vmatpush1.msra.mxu0 0.0
        %1807 = vmatprep.subr.mxu0 0.0
        %1808 = vmatpush1.msra.mxu0 0.0
        %1809 = vmatprep.subr.mxu0 0.0
        %1810 = vmatpush1.msra.mxu0 0.0
        %1811 = vmatprep.subr.mxu0 0.0
        %1812 = vmatpush1.msra.mxu0 0.0
        %1813 = vmatprep.subr.mxu0 0.0
        %1814 = vmatpush1.msra.mxu0 0.0
        %1815 = vmatprep.subr.mxu0 0.0
        %1816 = vmatpush1.msra.mxu0 0.0
        %1817 = vmatprep.subr.mxu0 0.0
        %1818 = vmatpush1.msra.mxu0 0.0
        %1819 = vmatprep.subr.mxu0 0.0
        %1820 = vmatpush1.msra.mxu0 0.0
        %1821 = vmatprep.subr.mxu0 0.0
        %1822 = vmatpush1.msra.mxu0 0.0
        %1823 = vmatprep.subr.mxu0 0.0
        %1824 = vmatpush1.msra.mxu0 0.0
        %1825 = vmatprep.subr.mxu0 0.0
        %1826 = vmatpush1.msra.mxu0 0.0
        %1827 = vmatprep.subr.mxu0 0.0
        %1828 = vmatpush1.msra.mxu0 0.0
        %1829 = vmatprep.subr.mxu0 0.0
        %1830 = vmatpush1.msra.mxu0 0.0
        %1831 = vmatprep.subr.mxu0 0.0
        %1832 = vmatpush1.msra.mxu0 0.0
        %1833 = vmatprep.mubr.f32.mxu0 0.0
        %1834 = vmatmul.mubr.f32.gmra.mrb[0].mxu0 %v1764
        %v1835 = vpop.f32.mrb[0].mxu0
        %v1836 = vadd.f32 0.0, %v1835
        %v1837 = vpop.f32.mrb[0].mxu0
        %1838 = vdwg.mxu0
        %v1840 = vsel %vm246, %v1304, 0
        %v1843 = vsel %vm1537, %v1530, 0
        %1845 = vmatprep.subr.mxu0 0.0
        %1846 = vmatpush1.msra.mxu0 %v1843
        %1847 = vmatprep.subr.mxu0 0.0
        %1848 = vmatpush1.msra.mxu0 0.0
        %1849 = vmatprep.subr.mxu0 0.0
        %1850 = vmatpush1.msra.mxu0 0.0
        %1851 = vmatprep.subr.mxu0 0.0
        %1852 = vmatpush1.msra.mxu0 0.0
        %1853 = vmatprep.subr.mxu0 0.0
        %1854 = vmatpush1.msra.mxu0 0.0
        %1855 = vmatprep.subr.mxu0 0.0
        %1856 = vmatpush1.msra.mxu0 0.0
        %1857 = vmatprep.subr.mxu0 0.0
        %1858 = vmatpush1.msra.mxu0 0.0
        %1859 = vmatprep.subr.mxu0 0.0
        %1860 = vmatpush1.msra.mxu0 0.0
        %1861 = vmatprep.subr.mxu0 0.0
        %1862 = vmatpush1.msra.mxu0 0.0
        %1863 = vmatprep.subr.mxu0 0.0
        %1864 = vmatpush1.msra.mxu0 0.0
        %1865 = vmatprep.subr.mxu0 0.0
        %1866 = vmatpush1.msra.mxu0 0.0
        %1867 = vmatprep.subr.mxu0 0.0
        %1868 = vmatpush1.msra.mxu0 0.0
        %1869 = vmatprep.subr.mxu0 0.0
        %1870 = vmatpush1.msra.mxu0 0.0
        %1871 = vmatprep.subr.mxu0 0.0
        %1872 = vmatpush1.msra.mxu0 0.0
        %1873 = vmatprep.subr.mxu0 0.0
        %1874 = vmatpush1.msra.mxu0 0.0
        %1875 = vmatprep.subr.mxu0 0.0
        %1876 = vmatpush1.msra.mxu0 0.0
        %1877 = vmatprep.subr.mxu0 0.0
        %1878 = vmatpush1.msra.mxu0 0.0
        %1879 = vmatprep.subr.mxu0 0.0
        %1880 = vmatpush1.msra.mxu0 0.0
        %1881 = vmatprep.subr.mxu0 0.0
        %1882 = vmatpush1.msra.mxu0 0.0
        %1883 = vmatprep.subr.mxu0 0.0
        %1884 = vmatpush1.msra.mxu0 0.0
        %1885 = vmatprep.subr.mxu0 0.0
        %1886 = vmatpush1.msra.mxu0 0.0
        %1887 = vmatprep.subr.mxu0 0.0
        %1888 = vmatpush1.msra.mxu0 0.0
        %1889 = vmatprep.subr.mxu0 0.0
        %1890 = vmatpush1.msra.mxu0 0.0
        %1891 = vmatprep.subr.mxu0 0.0
        %1892 = vmatpush1.msra.mxu0 0.0
        %1893 = vmatprep.subr.mxu0 0.0
        %1894 = vmatpush1.msra.mxu0 0.0
        %1895 = vmatprep.subr.mxu0 0.0
        %1896 = vmatpush1.msra.mxu0 0.0
        %1897 = vmatprep.subr.mxu0 0.0
        %1898 = vmatpush1.msra.mxu0 0.0
        %1899 = vmatprep.subr.mxu0 0.0
        %1900 = vmatpush1.msra.mxu0 0.0
        %1901 = vmatprep.subr.mxu0 0.0
        %1902 = vmatpush1.msra.mxu0 0.0
        %1903 = vmatprep.subr.mxu0 0.0
        %1904 = vmatpush1.msra.mxu0 0.0
        %1905 = vmatprep.subr.mxu0 0.0
        %1906 = vmatpush1.msra.mxu0 0.0
        %1907 = vmatprep.subr.mxu0 0.0
        %1908 = vmatpush1.msra.mxu0 0.0
        %1909 = vmatprep.mubr.f32.mxu0 0.0
        %1910 = vmatmul.mubr.f32.gmra.mrb[0].mxu0 %v1840
        %v1911 = vpop.f32.mrb[0].mxu0
        %v1912 = vadd.f32 0.0, %v1911
        %v1913 = vpop.f32.mrb[0].mxu0
        %1914 = vdwg.mxu0
        %v1916 = vsel %vm246, %v1377, 0
        %v1919 = vsel %vm1537, %v1531, 0
        %1921 = vmatprep.subr.mxu0 0.0
        %1922 = vmatpush1.msra.mxu0 %v1919
        %1923 = vmatprep.subr.mxu0 0.0
        %1924 = vmatpush1.msra.mxu0 0.0
        %1925 = vmatprep.subr.mxu0 0.0
        %1926 = vmatpush1.msra.mxu0 0.0
        %1927 = vmatprep.subr.mxu0 0.0
        %1928 = vmatpush1.msra.mxu0 0.0
        %1929 = vmatprep.subr.mxu0 0.0
        %1930 = vmatpush1.msra.mxu0 0.0
        %1931 = vmatprep.subr.mxu0 0.0
        %1932 = vmatpush1.msra.mxu0 0.0
        %1933 = vmatprep.subr.mxu0 0.0
        %1934 = vmatpush1.msra.mxu0 0.0
        %1935 = vmatprep.subr.mxu0 0.0
        %1936 = vmatpush1.msra.mxu0 0.0
        %1937 = vmatprep.subr.mxu0 0.0
        %1938 = vmatpush1.msra.mxu0 0.0
        %1939 = vmatprep.subr.mxu0 0.0
        %1940 = vmatpush1.msra.mxu0 0.0
        %1941 = vmatprep.subr.mxu0 0.0
        %1942 = vmatpush1.msra.mxu0 0.0
        %1943 = vmatprep.subr.mxu0 0.0
        %1944 = vmatpush1.msra.mxu0 0.0
        %1945 = vmatprep.subr.mxu0 0.0
        %1946 = vmatpush1.msra.mxu0 0.0
        %1947 = vmatprep.subr.mxu0 0.0
        %1948 = vmatpush1.msra.mxu0 0.0
        %1949 = vmatprep.subr.mxu0 0.0
        %1950 = vmatpush1.msra.mxu0 0.0
        %1951 = vmatprep.subr.mxu0 0.0
        %1952 = vmatpush1.msra.mxu0 0.0
        %1953 = vmatprep.subr.mxu0 0.0
        %1954 = vmatpush1.msra.mxu0 0.0
        %1955 = vmatprep.subr.mxu0 0.0
        %1956 = vmatpush1.msra.mxu0 0.0
        %1957 = vmatprep.subr.mxu0 0.0
        %1958 = vmatpush1.msra.mxu0 0.0
        %1959 = vmatprep.subr.mxu0 0.0
        %1960 = vmatpush1.msra.mxu0 0.0
        %1961 = vmatprep.subr.mxu0 0.0
        %1962 = vmatpush1.msra.mxu0 0.0
        %1963 = vmatprep.subr.mxu0 0.0
        %1964 = vmatpush1.msra.mxu0 0.0
        %1965 = vmatprep.subr.mxu0 0.0
        %1966 = vmatpush1.msra.mxu0 0.0
        %1967 = vmatprep.subr.mxu0 0.0
        %1968 = vmatpush1.msra.mxu0 0.0
        %1969 = vmatprep.subr.mxu0 0.0
        %1970 = vmatpush1.msra.mxu0 0.0
        %1971 = vmatprep.subr.mxu0 0.0
        %1972 = vmatpush1.msra.mxu0 0.0
        %1973 = vmatprep.subr.mxu0 0.0
        %1974 = vmatpush1.msra.mxu0 0.0
        %1975 = vmatprep.subr.mxu0 0.0
        %1976 = vmatpush1.msra.mxu0 0.0
        %1977 = vmatprep.subr.mxu0 0.0
        %1978 = vmatpush1.msra.mxu0 0.0
        %1979 = vmatprep.subr.mxu0 0.0
        %1980 = vmatpush1.msra.mxu0 0.0
        %1981 = vmatprep.subr.mxu0 0.0
        %1982 = vmatpush1.msra.mxu0 0.0
        %1983 = vmatprep.subr.mxu0 0.0
        %1984 = vmatpush1.msra.mxu0 0.0
        %1985 = vmatprep.mubr.f32.mxu0 0.0
        %1986 = vmatmul.mubr.f32.gmra.mrb[0].mxu0 %v1916
        %v1987 = vpop.f32.mrb[0].mxu0
        %v1988 = vadd.f32 0.0, %v1987
        %v1989 = vpop.f32.mrb[0].mxu0
        %1990 = vdwg.mxu0
        %v1992 = vsel %vm246, %v1450, 0
        %v1995 = vsel %vm1537, %v1532, 0
        %1997 = vmatprep.subr.mxu0 0.0
        %1998 = vmatpush1.msra.mxu0 %v1995
        %1999 = vmatprep.subr.mxu0 0.0
        %2000 = vmatpush1.msra.mxu0 0.0
        %2001 = vmatprep.subr.mxu0 0.0
        %2002 = vmatpush1.msra.mxu0 0.0
        %2003 = vmatprep.subr.mxu0 0.0
        %2004 = vmatpush1.msra.mxu0 0.0
        %2005 = vmatprep.subr.mxu0 0.0
        %2006 = vmatpush1.msra.mxu0 0.0
        %2007 = vmatprep.subr.mxu0 0.0
        %2008 = vmatpush1.msra.mxu0 0.0
        %2009 = vmatprep.subr.mxu0 0.0
        %2010 = vmatpush1.msra.mxu0 0.0
        %2011 = vmatprep.subr.mxu0 0.0
        %2012 = vmatpush1.msra.mxu0 0.0
        %2013 = vmatprep.subr.mxu0 0.0
        %2014 = vmatpush1.msra.mxu0 0.0
        %2015 = vmatprep.subr.mxu0 0.0
        %2016 = vmatpush1.msra.mxu0 0.0
        %2017 = vmatprep.subr.mxu0 0.0
        %2018 = vmatpush1.msra.mxu0 0.0
        %2019 = vmatprep.subr.mxu0 0.0
        %2020 = vmatpush1.msra.mxu0 0.0
        %2021 = vmatprep.subr.mxu0 0.0
        %2022 = vmatpush1.msra.mxu0 0.0
        %2023 = vmatprep.subr.mxu0 0.0
        %2024 = vmatpush1.msra.mxu0 0.0
        %2025 = vmatprep.subr.mxu0 0.0
        %2026 = vmatpush1.msra.mxu0 0.0
        %2027 = vmatprep.subr.mxu0 0.0
        %2028 = vmatpush1.msra.mxu0 0.0
        %2029 = vmatprep.subr.mxu0 0.0
        %2030 = vmatpush1.msra.mxu0 0.0
        %2031 = vmatprep.subr.mxu0 0.0
        %2032 = vmatpush1.msra.mxu0 0.0
        %2033 = vmatprep.subr.mxu0 0.0
        %2034 = vmatpush1.msra.mxu0 0.0
        %2035 = vmatprep.subr.mxu0 0.0
        %2036 = vmatpush1.msra.mxu0 0.0
        %2037 = vmatprep.subr.mxu0 0.0
        %2038 = vmatpush1.msra.mxu0 0.0
        %2039 = vmatprep.subr.mxu0 0.0
        %2040 = vmatpush1.msra.mxu0 0.0
        %2041 = vmatprep.subr.mxu0 0.0
        %2042 = vmatpush1.msra.mxu0 0.0
        %2043 = vmatprep.subr.mxu0 0.0
        %2044 = vmatpush1.msra.mxu0 0.0
        %2045 = vmatprep.subr.mxu0 0.0
        %2046 = vmatpush1.msra.mxu0 0.0
        %2047 = vmatprep.subr.mxu0 0.0
        %2048 = vmatpush1.msra.mxu0 0.0
        %2049 = vmatprep.subr.mxu0 0.0
        %2050 = vmatpush1.msra.mxu0 0.0
        %2051 = vmatprep.subr.mxu0 0.0
        %2052 = vmatpush1.msra.mxu0 0.0
        %2053 = vmatprep.subr.mxu0 0.0
        %2054 = vmatpush1.msra.mxu0 0.0
        %2055 = vmatprep.subr.mxu0 0.0
        %2056 = vmatpush1.msra.mxu0 0.0
        %2057 = vmatprep.subr.mxu0 0.0
        %2058 = vmatpush1.msra.mxu0 0.0
        %2059 = vmatprep.subr.mxu0 0.0
        %2060 = vmatpush1.msra.mxu0 0.0
        %2061 = vmatprep.mubr.f32.mxu0 0.0
        %2062 = vmatmul.mubr.f32.gmra.mrb[0].mxu0 %v1992
        %v2063 = vpop.f32.mrb[0].mxu0
        %v2064 = vadd.f32 0.0, %v2063
        %v2065 = vpop.f32.mrb[0].mxu0
        %2066 = vdwg.mxu0
        %v2068 = vsel %vm246, %v1523, 0
        %v2071 = vsel %vm1537, %v1533, 0
        %2073 = vmatprep.subr.mxu0 0.0
        %2074 = vmatpush1.msra.mxu0 %v2071
        %2075 = vmatprep.subr.mxu0 0.0
        %2076 = vmatpush1.msra.mxu0 0.0
        %2077 = vmatprep.subr.mxu0 0.0
        %2078 = vmatpush1.msra.mxu0 0.0
        %2079 = vmatprep.subr.mxu0 0.0
        %2080 = vmatpush1.msra.mxu0 0.0
        %2081 = vmatprep.subr.mxu0 0.0
        %2082 = vmatpush1.msra.mxu0 0.0
        %2083 = vmatprep.subr.mxu0 0.0
        %2084 = vmatpush1.msra.mxu0 0.0
        %2085 = vmatprep.subr.mxu0 0.0
        %2086 = vmatpush1.msra.mxu0 0.0
        %2087 = vmatprep.subr.mxu0 0.0
        %2088 = vmatpush1.msra.mxu0 0.0
        %2089 = vmatprep.subr.mxu0 0.0
        %2090 = vmatpush1.msra.mxu0 0.0
        %2091 = vmatprep.subr.mxu0 0.0
        %2092 = vmatpush1.msra.mxu0 0.0
        %2093 = vmatprep.subr.mxu0 0.0
        %2094 = vmatpush1.msra.mxu0 0.0
        %2095 = vmatprep.subr.mxu0 0.0
        %2096 = vmatpush1.msra.mxu0 0.0
        %2097 = vmatprep.subr.mxu0 0.0
        %2098 = vmatpush1.msra.mxu0 0.0
        %2099 = vmatprep.subr.mxu0 0.0
        %2100 = vmatpush1.msra.mxu0 0.0
        %2101 = vmatprep.subr.mxu0 0.0
        %2102 = vmatpush1.msra.mxu0 0.0
        %2103 = vmatprep.subr.mxu0 0.0
        %2104 = vmatpush1.msra.mxu0 0.0
        %2105 = vmatprep.subr.mxu0 0.0
        %2106 = vmatpush1.msra.mxu0 0.0
        %2107 = vmatprep.subr.mxu0 0.0
        %2108 = vmatpush1.msra.mxu0 0.0
        %2109 = vmatprep.subr.mxu0 0.0
        %2110 = vmatpush1.msra.mxu0 0.0
        %2111 = vmatprep.subr.mxu0 0.0
        %2112 = vmatpush1.msra.mxu0 0.0
        %2113 = vmatprep.subr.mxu0 0.0
        %2114 = vmatpush1.msra.mxu0 0.0
        %2115 = vmatprep.subr.mxu0 0.0
        %2116 = vmatpush1.msra.mxu0 0.0
        %2117 = vmatprep.subr.mxu0 0.0
        %2118 = vmatpush1.msra.mxu0 0.0
        %2119 = vmatprep.subr.mxu0 0.0
        %2120 = vmatpush1.msra.mxu0 0.0
        %2121 = vmatprep.subr.mxu0 0.0
        %2122 = vmatpush1.msra.mxu0 0.0
        %2123 = vmatprep.subr.mxu0 0.0
        %2124 = vmatpush1.msra.mxu0 0.0
        %2125 = vmatprep.subr.mxu0 0.0
        %2126 = vmatpush1.msra.mxu0 0.0
        %2127 = vmatprep.subr.mxu0 0.0
        %2128 = vmatpush1.msra.mxu0 0.0
        %2129 = vmatprep.subr.mxu0 0.0
        %2130 = vmatpush1.msra.mxu0 0.0
        %2131 = vmatprep.subr.mxu0 0.0
        %2132 = vmatpush1.msra.mxu0 0.0
        %2133 = vmatprep.subr.mxu0 0.0
        %2134 = vmatpush1.msra.mxu0 0.0
        %2135 = vmatprep.subr.mxu0 0.0
        %2136 = vmatpush1.msra.mxu0 0.0
        %2137 = vmatprep.mubr.f32.mxu0 0.0
        %2138 = vmatmul.mubr.f32.gmra.mrb[0].mxu0 %v2068
        %v2139 = vpop.f32.mrb[0].mxu0
        %v2140 = vadd.f32 0.0, %v2139
        %v2141 = vpop.f32.mrb[0].mxu0
        %2142 = vdwg.mxu0
        %v2143 = vadd.f32 %v1608, %v1684
        %v2144 = vadd.f32 %v2143, %v1760
        %v2145 = vadd.f32 %v2144, %v1836
        %v2146 = vadd.f32 %v2145, %v1912
        %v2147 = vadd.f32 %v2146, %v1988
        %v2148 = vadd.f32 %v2147, %v2064
        %v2149 = vadd.f32 %v2148, %v2140
        %v2150 = vld [vmem:[%s3] sm:$0x1]
        %v2152 = vlaneseq
        %v2153 = vshrl.u32 %v2152, 7
        %v2154 = vsub.s32 0, %v2153
        %v2155 = vrot.slane %v2150, %v2154
        %v2157 = vadd.f32 %v2149, %v2155
        %2158 = vst [vmem:[%s225] sm:$0xff] %v2157
        %s2159 = sand.u32 %s136, 1
        %s2160 = scalar_lea.sflag [#allocation3], %s2159
        %s2161 = sand.u32 %s136, 1
        %s2162 = smul.addr %s2161, 8
        %s2163 = scalar_lea.vmem [#allocation2], %s2162
        // Predicated region
        $region37: #{tpu_custom_call.1} parent=35 // pred_check
          %p2164 = pneg %p146
        $region38: #{tpu_custom_call.1} parent=35 // pred_check_branch
          %2166 = sbr.rel (%p2164) target = $region40
        $region39: #{tpu_custom_call.1} parent=35 // pred_region
          %s2168 = ssub.s32 128, 128
          %2169 = vsyncadd %s2160, %s2168
          %s2170 = sadd.s32 %s23, %s22
          %s2171 = smul.addr %s2170, 128
          %s2172 = scalar_lea.hbm %s4, %s2171
          %s2174 = sshll.u32 %s2163, 4
          %s2175 = int_to_ptr.vmem [resolvable:$true] %s2174
          %2177 = dma.vmem_to_hbm [thread:$0]  %s2175, 128, %s2172, %s2160
        $region40: #{tpu_custom_call.1} parent=35 // pred_fallthru
          _
      $region36: #{tpu_custom_call.1} parent=5 // pred_fallthru
        _
      %p2178 = scmp.le.s32.totalorder 2, %s13
      // Predicated region
      $region41: #{tpu_custom_call.1} parent=5 // pred_check
        %p2179 = pneg %p2178
      $region42: #{tpu_custom_call.1} parent=5 // pred_check_branch
        %2181 = sbr.rel (%p2179) target = $region44
      $region43: #{tpu_custom_call.1} parent=5 // pred_region
        %s2182 = ssub.s32 %s13, 2
        // Predicated region
        $region45: #{tpu_custom_call.1} parent=43 // pred_check
          %p2183 = pneg %p152
        $region46: #{tpu_custom_call.1} parent=43 // pred_check_branch
          %2185 = sbr.rel (%p2183) target = $region48
        $region47: #{tpu_custom_call.1} parent=43 // pred_region
          %s2186 = sand.u32 %s137, 1
          %s2187 = scalar_lea.sflag [#allocation3], %s2186
          %s2188 = sand.u32 %s137, 1
          %s2189 = smul.addr %s2188, 8
          %s2190 = scalar_lea.vmem [#allocation2], %s2189
          %2191 = dma.done %s2187, 128
        $region48: #{tpu_custom_call.1} parent=43 // pred_fallthru
          _
      $region44: #{tpu_custom_call.1} parent=5 // pred_fallthru
        _
    $region6: #{tpu_custom_call.1} parent=1 // loop_footer
      %s17 = sadd.s32 1, %s13
    $region7: #{tpu_custom_call.1} parent=1 // loop_footer_branch
      %12 = sbr.rel target = $region3
    $region8: #{tpu_custom_call.1} parent=1 // loop_exit
      _
    %2192 = vsyncpa [#allocation3], 1
    %s2193 = scalar_lea.sflag [#allocation3], 1
    %2194 = vsyncpa %s2193, 1

</llo_original>
